<compile_context>
chip_gen: v5e
topology: v5e:2x2
jax: 0.10.0
libtpu: 0.0.40
codegen_flags: <defaults>
</compile_context>

<pallas_src>
import jax
import jax.numpy as jnp
from jax import lax
from jax.experimental import pallas as pl
from jax.experimental.pallas import tpu as pltpu


# ---------------------------------------------------------------------------
# Kernel 1: batched, hx-independent precompute (parallel over time chunks)
# ---------------------------------------------------------------------------
def precompute_kernel(
    feats_ref, frame_ref,                                  # (TB,N,B,C), (TB,B,Ff)
    obj_w_ref, obj_b_ref,                                  # BN-folded object layer
    att_ua_ref, att_ba_ref,                                # attention image projection
    frame_w_ref, frame_b_ref,                              # frame layer
    w_ih_img_ref, lstm_b_ref,                              # hx-independent LSTM pre-gate
    obj_ref, ipart_ref, pregate_ref, mask_ref,             # outputs
):
    TB, N, B, C = feats_ref.shape
    H = obj_w_ref.shape[1]
    G4 = w_ih_img_ref.shape[1]

    feats = feats_ref[...]                                            # (TB,N,B,C) f32

    # zero-object mask on the RAW f32 features (exactly like the torch code)
    mask = (jnp.sum(feats, axis=-1) != 0.0).astype(jnp.float32)       # (TB,N,B)
    mask_ref[...] = mask

    # object layer (BN folded into obj_w/obj_b in the wrapper) + ReLU + mask
    x = feats.reshape(TB * N * B, C).astype(jnp.bfloat16)
    obj = jnp.dot(x, obj_w_ref[...], preferred_element_type=jnp.float32) + obj_b_ref[...]
    obj = jnp.maximum(obj, 0.0).reshape(TB, N, B, H) * mask[..., None]
    obj_ref[...] = obj

    # attention image part: obj @ att_ua + att_ba  (uses the masked obj)
    obj_bf = obj.reshape(TB * N * B, H).astype(jnp.bfloat16)
    ipart = (jnp.dot(obj_bf, att_ua_ref[...], preferred_element_type=jnp.float32)
             + att_ba_ref[...])
    ipart_ref[...] = ipart.reshape(TB, N, B, H)

    # frame layer on the (already pooled) frame features, then LSTM pre-gate
    frame = frame_ref[...].reshape(TB * B, -1).astype(jnp.bfloat16)
    img = (jnp.dot(frame, frame_w_ref[...], preferred_element_type=jnp.float32)
           + frame_b_ref[...])                                        # (TB*B, H)
    pregate = (jnp.dot(img.astype(jnp.bfloat16), w_ih_img_ref[...],
                       preferred_element_type=jnp.float32)
               + lstm_b_ref[...])                                     # (TB*B, 4L)
    pregate_ref[...] = pregate.reshape(TB, B, G4)


# ---------------------------------------------------------------------------
# Kernel 2: recurrent LSTM + attention, single invocation, unrolled over T
# ---------------------------------------------------------------------------
def recurrent_kernel(
    obj_ref, ipart_ref, pregate_ref, mask_ref,             # (T,N,B,H) (T,N,B,H) (T,B,4L) (T,N,B)
    hxw_ref,                                               # (L, H+4L) = [att_wa | w_hh]
    w_ih_att_ref,                                          # (H, 4L)
    att_w_ref,                                             # (1, H)
    out_w_ref, out_b_ref,                                  # (L, 2), (1, 2)
    out_ref, soft_ref, alphas_ref,                          # (T,B,2) (T,B,2) (T,N,B)
):
    T, N, B, H = obj_ref.shape
    L = hxw_ref.shape[0]

    att_w = att_w_ref[...].reshape(1, 1, H)
    hx_w = hxw_ref[...]
    w_ih_att = w_ih_att_ref[...]
    out_w = out_w_ref[...]
    out_b = out_b_ref[...]

    def step(t, carry):
        hx, cx = carry
        obj = obj_ref[t]                                   # (N, B, H)
        ipart = ipart_ref[t]                               # (N, B, H)
        mask = mask_ref[t]                                 # (N, B)
        pregate = pregate_ref[t]                           # (B, 4L)

        # one fused recurrent matmul: [att_wa | w_hh]
        hproj = jnp.dot(hx, hx_w, preferred_element_type=jnp.float32)  # (B, H+4L)
        h_part = hproj[:, :H]                              # attention term
        h_gates = hproj[:, H:]                             # LSTM hidden term

        # attention scores + softmax over objects, then mask (torch order)
        e = jnp.maximum(h_part[None, :, :] + ipart, 0.0)   # (N, B, H)
        scores = jnp.sum(e * att_w, axis=-1)               # (N, B)
        s_max = jnp.max(scores, axis=0, keepdims=True)
        s_exp = jnp.exp(scores - s_max)
        al = (s_exp / jnp.sum(s_exp, axis=0, keepdims=True)) * mask

        attention = jnp.sum(al[:, :, None] * obj, axis=0)  # (B, H)

        # LSTMCell (Dropout is identity in eval mode); gate order i, f, g, o
        gates = (pregate + h_gates
                 + jnp.dot(attention, w_ih_att, preferred_element_type=jnp.float32))
        i_g = jax.nn.sigmoid(gates[:, 0 * L:1 * L])
        f_g = jax.nn.sigmoid(gates[:, 1 * L:2 * L])
        g_g = jnp.tanh(gates[:, 2 * L:3 * L])
        o_g = jax.nn.sigmoid(gates[:, 3 * L:4 * L])
        cx_new = f_g * cx + i_g * g_g
        hx_new = o_g * jnp.tanh(cx_new)

        # output layer + per-frame softmax
        pred = jnp.dot(hx_new, out_w, preferred_element_type=jnp.float32) + out_b
        p_max = jnp.max(pred, axis=1, keepdims=True)
        p_exp = jnp.exp(pred - p_max)
        soft = p_exp / jnp.sum(p_exp, axis=1, keepdims=True)

        out_ref[t] = pred
        soft_ref[t] = soft
        alphas_ref[t] = al
        return hx_new, cx_new

    hx0 = jnp.zeros((B, L), jnp.float32)
    cx0 = jnp.zeros((B, L), jnp.float32)
    lax.fori_loop(0, T, step, (hx0, cx0), unroll=True)


# ---------------------------------------------------------------------------
# Wrapper
# ---------------------------------------------------------------------------
def baseline_sa_forward(input_features, input_frame, params):
    B, T, N, C = input_features.shape
    _, _, Ff, Hs, Ws = input_frame.shape
    H = params["frame_w"].shape[1]
    L = params["w_hh_t"].shape[0]

    # ---- layout glue + AdaptiveAvgPool done once, outside the kernels ----
    feats_tm = jnp.transpose(input_features, (1, 2, 0, 3))            # (T, N, B, C)
    frame_pool = jnp.mean(input_frame.reshape(B, T, Ff, Hs * Ws), axis=-1)   # (B, T, Ff)
    frame_tm = jnp.transpose(frame_pool, (1, 0, 2))                   # (T, B, Ff)

    # ---- fold eval-mode BatchNorm1d into the object layer (exact algebra) ----
    scale = params["bn_scale"].reshape(C)
    shift = params["bn_shift"].reshape(C)
    obj_w_f = params["obj_w"] * scale[:, None]                        # (C, H)
    obj_b_f = params["obj_b"] + shift @ params["obj_w"]               # (1, H)

    # bf16 operands for the batched MXU precompute (f32 accumulation)
    bf16 = jnp.bfloat16
    pre_weights = [
        obj_w_f.astype(bf16), obj_b_f,
        params["att_ua"].astype(bf16), params["att_ba"],
        params["frame_w"].astype(bf16), params["frame_b"],
        params["w_ih_img"].astype(bf16), params["lstm_b"],
    ]

    def const_spec(arr):
        nd = arr.ndim
        return pl.BlockSpec(arr.shape, lambda g, _nd=nd: (0,) * _nd)

    # ---- kernel 1: hx-independent precompute, parallel over time chunks ----
    PG = 2 if T % 2 == 0 else 1
    TB = T // PG
    obj_all, ipart_all, pregate_all, mask_all = pl.pallas_call(
        precompute_kernel,
        grid=(PG,),
        in_specs=[pl.BlockSpec((TB, N, B, C), lambda g: (g, 0, 0, 0)),
                  pl.BlockSpec((TB, B, Ff), lambda g: (g, 0, 0))]
                 + [const_spec(w) for w in pre_weights],
        out_specs=(pl.BlockSpec((TB, N, B, H), lambda g: (g, 0, 0, 0)),
                   pl.BlockSpec((TB, N, B, H), lambda g: (g, 0, 0, 0)),
                   pl.BlockSpec((TB, B, 4 * L), lambda g: (g, 0, 0)),
                   pl.BlockSpec((TB, N, B), lambda g: (g, 0, 0))),
        out_shape=(jax.ShapeDtypeStruct((T, N, B, H), jnp.float32),
                   jax.ShapeDtypeStruct((T, N, B, H), jnp.float32),
                   jax.ShapeDtypeStruct((T, B, 4 * L), jnp.float32),
                   jax.ShapeDtypeStruct((T, N, B), jnp.float32)),
        compiler_params=pltpu.CompilerParams(dimension_semantics=("parallel",)),
    )(feats_tm, frame_tm, *pre_weights)

    # ---- kernel 2: recurrence, single invocation, everything resident in VMEM ----
    hx_w = jnp.concatenate([params["att_wa"], params["w_hh_t"]], axis=1)  # (L, H+4L)
    rec_inputs = [obj_all, ipart_all, pregate_all, mask_all,
                  hx_w, params["w_ih_att"], params["att_w"],
                  params["out_w"], params["out_b"]]

    out_stack, soft_tm, alphas_tm = pl.pallas_call(
        recurrent_kernel,
        grid=(1,),
        in_specs=[const_spec(a) for a in rec_inputs],
        out_specs=(pl.BlockSpec((T, B, 2), lambda g: (0, 0, 0)),
                   pl.BlockSpec((T, B, 2), lambda g: (0, 0, 0)),
                   pl.BlockSpec((T, N, B), lambda g: (0, 0, 0))),
        out_shape=(jax.ShapeDtypeStruct((T, B, 2), jnp.float32),
                   jax.ShapeDtypeStruct((T, B, 2), jnp.float32),
                   jax.ShapeDtypeStruct((T, N, B), jnp.float32)),
        compiler_params=pltpu.CompilerParams(dimension_semantics=("arbitrary",)),
    )(*rec_inputs)

    soft_pred = jnp.transpose(soft_tm, (1, 0, 2))        # (B, T, 2)
    all_alphas = jnp.transpose(alphas_tm, (2, 0, 1))     # (B, T, N)
    return soft_pred, all_alphas, out_stack              # out_stack: (T, B, 2)


# ---------------------------------------------------------------------------
# Pure-JAX reference with identical semantics (for verification)
# ---------------------------------------------------------------------------
def reference_forward(input_features, input_frame, params):
    B, T, N, C = input_features.shape
    _, _, Ff, Hs, Ws = input_frame.shape
    H = params["frame_w"].shape[1]
    L = params["w_hh_t"].shape[0]
    feats_tm = jnp.transpose(input_features, (1, 2, 0, 3))
    frame_pool = jnp.mean(input_frame.reshape(B, T, Ff, Hs * Ws), axis=-1)
    mask = (jnp.sum(feats_tm, axis=-1) != 0.0).astype(jnp.float32)
    hx = jnp.zeros((B, L), jnp.float32)
    cx = jnp.zeros((B, L), jnp.float32)
    preds, softs, alphas_all = [], [], []
    for t in range(T):
        x = feats_tm[t] * params["bn_scale"].reshape(1, 1, C) + params["bn_shift"].reshape(1, 1, C)
        obj = jax.nn.relu(x.reshape(N * B, C) @ params["obj_w"] + params["obj_b"])
        obj = obj.reshape(N, B, H) * mask[t][:, :, None]
        img = frame_pool[:, t] @ params["frame_w"] + params["frame_b"]
        image_part = (obj.reshape(N * B, H) @ params["att_ua"] + params["att_ba"]).reshape(N, B, H)
        e = jax.nn.relu(hx @ params["att_wa"] + image_part)
        scores = jnp.sum(e * params["att_w"].reshape(1, 1, H), axis=-1)
        al = jax.nn.softmax(scores, axis=0) * mask[t]
        attention = jnp.sum(al[:, :, None] * obj, axis=0)
        gates = (img @ params["w_ih_img"] + attention @ params["w_ih_att"]
                 + hx @ params["w_hh_t"] + params["lstm_b"])
        i_g = jax.nn.sigmoid(gates[:, :L]); f_g = jax.nn.sigmoid(gates[:, L:2 * L])
        g_g = jnp.tanh(gates[:, 2 * L:3 * L]); o_g = jax.nn.sigmoid(gates[:, 3 * L:])
        cx = f_g * cx + i_g * g_g
        hx = o_g * jnp.tanh(cx)
        pred = hx @ params["out_w"] + params["out_b"]
        preds.append(pred)
        softs.append(jax.nn.softmax(pred, axis=1))
        alphas_all.append(al)
    out_stack = jnp.stack(preds)
    soft_pred = jnp.transpose(jnp.stack(softs), (1, 0, 2))
    all_alphas = jnp.transpose(jnp.stack(alphas_all), (2, 0, 1))
    return soft_pred, all_alphas, out_stack


def init_params(key, C, Ff, H, L):
    ks = jax.random.split(key, 16)

    def nrm(k, shape, std=0.05):
        return std * jax.random.normal(k, shape, dtype=jnp.float32)

    p = {}
    p["frame_w"] = nrm(ks[0], (Ff, H))
    p["frame_b"] = nrm(ks[1], (1, H))
    p["obj_w"] = nrm(ks[2], (C, H))
    p["obj_b"] = nrm(ks[3], (1, H))
    # BatchNorm1d(C) eval-mode parameters folded to per-channel scale/shift
    gamma = 1.0 + 0.1 * jax.random.normal(ks[4], (C,), dtype=jnp.float32)
    beta = 0.1 * jax.random.normal(ks[5], (C,), dtype=jnp.float32)
    rmean = 0.1 * jax.random.normal(ks[6], (C,), dtype=jnp.float32)
    rvar = 1.0 + 0.1 * jax.random.uniform(ks[7], (C,), dtype=jnp.float32)
    scale = gamma / jnp.sqrt(rvar + 1e-5)
    p["bn_scale"] = scale.reshape(1, C)
    p["bn_shift"] = (beta - rmean * scale).reshape(1, C)
    # attention params (module init: normal std=0.01, att_ba = zeros)
    p["att_w"] = (0.01 * jax.random.normal(ks[8], (H, 1), dtype=jnp.float32)).reshape(1, H)
    p["att_wa"] = 0.01 * jax.random.normal(ks[9], (L, H), dtype=jnp.float32)
    p["att_ua"] = 0.01 * jax.random.normal(ks[10], (H, H), dtype=jnp.float32)
    p["att_ba"] = jnp.zeros((1, H), jnp.float32)
    # LSTMCell(fusion=2H, L): torch weight_ih (4L, 2H), weight_hh (4L, L); gate order i,f,g,o
    w_ih_t = nrm(ks[11], (4 * L, 2 * H)).T           # (2H, 4L)
    p["w_ih_img"] = w_ih_t[:H]
    p["w_ih_att"] = w_ih_t[H:]
    p["w_hh_t"] = nrm(ks[12], (4 * L, L)).T          # (L, 4L)
    p["lstm_b"] = (nrm(ks[13], (4 * L,)) + nrm(ks[14], (4 * L,))).reshape(1, 4 * L)
    p["out_w"] = nrm(ks[15], (L, 2))
    p["out_b"] = jnp.zeros((1, 2), jnp.float32)
    return p


if __name__ == "__main__":
    # small shapes consistent with the module (object_num, n_frame, feature dims scaled down)
    B, T, N = 8, 8, 8           # batch, n_frame, object_num
    C, Ff = 256, 128            # features_size, frame_features_size
    H, L = 128, 128             # hidden_layer_size, lstm_size
    Hs = Ws = 4                 # spatial dims of the per-frame feature map

    key = jax.random.PRNGKey(0)
    k_feat, k_keep, k_frame, k_par = jax.random.split(key, 4)

    input_features = jax.random.normal(k_feat, (B, T, N, C), dtype=jnp.float32)
    # zero out some objects so the zeros_object mask path is exercised
    keep = jax.random.bernoulli(k_keep, 0.75, (B, T, N, 1)).astype(jnp.float32)
    input_features = input_features * keep
    input_frame = jax.random.normal(k_frame, (B, T, Ff, Hs, Ws), dtype=jnp.float32)

    params = init_params(k_par, C, Ff, H, L)

    outs = baseline_sa_forward(input_features, input_frame, params)
    outs = jax.block_until_ready(outs)

    refs = reference_forward(input_features, input_frame, params)
    names = ["soft_pred", "all_alphas", "out_stack"]
    for got, ref, name in zip(outs, refs, names):
        assert got.shape == ref.shape, (name, got.shape, ref.shape)
        if not bool(jnp.allclose(got, ref, rtol=5e-2, atol=5e-2)):
            raise AssertionError(f"mismatch in {name}")

    print("KERNEL_OK")
</pallas_src>

<mosaic_0001>
module attributes {stable_mosaic.version = 11 : i64} {
  func.func @precompute_kernel(%arg0: i32, %arg1: memref<4x8x8x256xf32, #tpu.memory_space<vmem>>, %arg2: memref<4x8x128xf32, #tpu.memory_space<vmem>>, %arg3: memref<256x128xbf16, #tpu.memory_space<vmem>>, %arg4: memref<1x128xf32, #tpu.memory_space<vmem>>, %arg5: memref<128x128xbf16, #tpu.memory_space<vmem>>, %arg6: memref<1x128xf32, #tpu.memory_space<vmem>>, %arg7: memref<128x128xbf16, #tpu.memory_space<vmem>>, %arg8: memref<1x128xf32, #tpu.memory_space<vmem>>, %arg9: memref<128x512xbf16, #tpu.memory_space<vmem>>, %arg10: memref<1x512xf32, #tpu.memory_space<vmem>>, %arg11: memref<4x8x8x128xf32, #tpu.memory_space<vmem>>, %arg12: memref<4x8x8x128xf32, #tpu.memory_space<vmem>>, %arg13: memref<4x8x512xf32, #tpu.memory_space<vmem>>, %arg14: memref<4x8x8xf32, #tpu.memory_space<vmem>>) attributes {dimension_semantics = [#tpu.dimension_semantics<parallel>], iteration_bounds = array<i64: 2>, scalar_prefetch = 0 : i64, scratch_operands = 0 : i64, tpu.core_type = #tpu.core_type<tc>, window_params = [{transform_indices = @transform_0, window_bounds = array<i64: 4, 8, 8, 256>}, {transform_indices = @transform_1, window_bounds = array<i64: 4, 8, 128>}, {pipeline_mode = #tpu.pipeline_mode<synchronous>, transform_indices = @transform_2, window_bounds = array<i64: 256, 128>}, {pipeline_mode = #tpu.pipeline_mode<synchronous>, transform_indices = @transform_3, window_bounds = array<i64: 1, 128>}, {pipeline_mode = #tpu.pipeline_mode<synchronous>, transform_indices = @transform_4, window_bounds = array<i64: 128, 128>}, {pipeline_mode = #tpu.pipeline_mode<synchronous>, transform_indices = @transform_5, window_bounds = array<i64: 1, 128>}, {pipeline_mode = #tpu.pipeline_mode<synchronous>, transform_indices = @transform_6, window_bounds = array<i64: 128, 128>}, {pipeline_mode = #tpu.pipeline_mode<synchronous>, transform_indices = @transform_7, window_bounds = array<i64: 1, 128>}, {pipeline_mode = #tpu.pipeline_mode<synchronous>, transform_indices = @transform_8, window_bounds = array<i64: 128, 512>}, {pipeline_mode = #tpu.pipeline_mode<synchronous>, transform_indices = @transform_9, window_bounds = array<i64: 1, 512>}, {transform_indices = @transform_10, window_bounds = array<i64: 4, 8, 8, 128>}, {transform_indices = @transform_11, window_bounds = array<i64: 4, 8, 8, 128>}, {transform_indices = @transform_12, window_bounds = array<i64: 4, 8, 512>}, {transform_indices = @transform_13, window_bounds = array<i64: 4, 8, 8>}]} {
    %c0 = arith.constant 0 : index
    %c0_0 = arith.constant 0 : index
    %c0_1 = arith.constant 0 : index
    %c0_2 = arith.constant 0 : index
    %0 = vector.load %arg1[%c0, %c0_0, %c0_1, %c0_2] : memref<4x8x8x256xf32, #tpu.memory_space<vmem>>, vector<4x8x8x256xf32>
    %cst = arith.constant dense<0.000000e+00> : vector<4x8x8xf32>
    %1 = vector.multi_reduction <add>, %0, %cst [3] : vector<4x8x8x256xf32> to vector<4x8x8xf32>
    %cst_3 = arith.constant 0.000000e+00 : f32
    %2 = vector.broadcast %cst_3 : f32 to vector<4x8x8xf32>
    %3 = arith.cmpf one, %1, %2 : vector<4x8x8xf32>
    %4 = arith.extui %3 : vector<4x8x8xi1> to vector<4x8x8xi32>
    %5 = arith.sitofp %4 : vector<4x8x8xi32> to vector<4x8x8xf32>
    %c0_4 = arith.constant 0 : index
    %c0_5 = arith.constant 0 : index
    %c0_6 = arith.constant 0 : index
    %6 = vector.load %arg14[%c0_4, %c0_5, %c0_6] : memref<4x8x8xf32, #tpu.memory_space<vmem>>, vector<4x8x8xf32>
    tpu.vector_store %arg14[%c0_4, %c0_5, %c0_6], %5 {strides = array<i32>} : memref<4x8x8xf32, #tpu.memory_space<vmem>>, vector<4x8x8xf32>,
    %7 = vector.shape_cast %0 : vector<4x8x8x256xf32> to vector<256x256xf32>
    %8 = arith.truncf %7 : vector<256x256xf32> to vector<256x256xbf16>
    %c0_7 = arith.constant 0 : index
    %c0_8 = arith.constant 0 : index
    %9 = vector.load %arg3[%c0_7, %c0_8] : memref<256x128xbf16, #tpu.memory_space<vmem>>, vector<256x128xbf16>
    %cst_9 = arith.constant dense<0.000000e+00> : vector<256x128xf32>
    %10 = tpu.matmul %8, %9, %cst_9 {dimension_numbers = #tpu.dot_dimension_numbers<[1], [0], [0], [1], [0, 0, 1, 1], [], []>} : vector<256x256xbf16>, vector<256x128xbf16>, vector<256x128xf32> -> vector<256x128xf32>
    %c0_10 = arith.constant 0 : index
    %c0_11 = arith.constant 0 : index
    %11 = vector.load %arg4[%c0_10, %c0_11] : memref<1x128xf32, #tpu.memory_space<vmem>>, vector<1x128xf32>
    %12 = vector.broadcast %11 : vector<1x128xf32> to vector<256x128xf32>
    %13 = arith.addf %10, %12 : vector<256x128xf32>
    %cst_12 = arith.constant 0.000000e+00 : f32
    %14 = vector.broadcast %cst_12 : f32 to vector<256x128xf32>
    %15 = arith.maximumf %13, %14 : vector<256x128xf32>
    %16 = vector.shape_cast %15 : vector<256x128xf32> to vector<4x8x8x128xf32>
    %17 = vector.shape_cast %5 : vector<4x8x8xf32> to vector<4x8x8x1xf32>
    %18 = vector.broadcast %17 : vector<4x8x8x1xf32> to vector<4x8x8x128xf32>
    %19 = arith.mulf %16, %18 : vector<4x8x8x128xf32>
    %c0_13 = arith.constant 0 : index
    %c0_14 = arith.constant 0 : index
    %c0_15 = arith.constant 0 : index
    %c0_16 = arith.constant 0 : index
    %20 = vector.load %arg11[%c0_13, %c0_14, %c0_15, %c0_16] : memref<4x8x8x128xf32, #tpu.memory_space<vmem>>, vector<4x8x8x128xf32>
    tpu.vector_store %arg11[%c0_13, %c0_14, %c0_15, %c0_16], %19 {strides = array<i32>} : memref<4x8x8x128xf32, #tpu.memory_space<vmem>>, vector<4x8x8x128xf32>,
    %21 = vector.shape_cast %19 : vector<4x8x8x128xf32> to vector<256x128xf32>
    %22 = arith.truncf %21 : vector<256x128xf32> to vector<256x128xbf16>
    %c0_17 = arith.constant 0 : index
    %c0_18 = arith.constant 0 : index
    %23 = vector.load %arg5[%c0_17, %c0_18] : memref<128x128xbf16, #tpu.memory_space<vmem>>, vector<128x128xbf16>
    %cst_19 = arith.constant dense<0.000000e+00> : vector<256x128xf32>
    %24 = tpu.matmul %22, %23, %cst_19 {dimension_numbers = #tpu.dot_dimension_numbers<[1], [0], [0], [1], [0, 0, 1, 1], [], []>} : vector<256x128xbf16>, vector<128x128xbf16>, vector<256x128xf32> -> vector<256x128xf32>
    %c0_20 = arith.constant 0 : index
    %c0_21 = arith.constant 0 : index
    %25 = vector.load %arg6[%c0_20, %c0_21] : memref<1x128xf32, #tpu.memory_space<vmem>>, vector<1x128xf32>
    %26 = vector.broadcast %25 : vector<1x128xf32> to vector<256x128xf32>
    %27 = arith.addf %24, %26 : vector<256x128xf32>
    %28 = vector.shape_cast %27 : vector<256x128xf32> to vector<4x8x8x128xf32>
    %c0_22 = arith.constant 0 : index
    %c0_23 = arith.constant 0 : index
    %c0_24 = arith.constant 0 : index
    %c0_25 = arith.constant 0 : index
    %29 = vector.load %arg12[%c0_22, %c0_23, %c0_24, %c0_25] : memref<4x8x8x128xf32, #tpu.memory_space<vmem>>, vector<4x8x8x128xf32>
    tpu.vector_store %arg12[%c0_22, %c0_23, %c0_24, %c0_25], %28 {strides = array<i32>} : memref<4x8x8x128xf32, #tpu.memory_space<vmem>>, vector<4x8x8x128xf32>,
    %c0_26 = arith.constant 0 : index
    %c0_27 = arith.constant 0 : index
    %c0_28 = arith.constant 0 : index
    %30 = vector.load %arg2[%c0_26, %c0_27, %c0_28] : memref<4x8x128xf32, #tpu.memory_space<vmem>>, vector<4x8x128xf32>
    %31 = vector.shape_cast %30 : vector<4x8x128xf32> to vector<32x128xf32>
    %32 = arith.truncf %31 : vector<32x128xf32> to vector<32x128xbf16>
    %c0_29 = arith.constant 0 : index
    %c0_30 = arith.constant 0 : index
    %33 = vector.load %arg7[%c0_29, %c0_30] : memref<128x128xbf16, #tpu.memory_space<vmem>>, vector<128x128xbf16>
    %cst_31 = arith.constant dense<0.000000e+00> : vector<32x128xf32>
    %34 = tpu.matmul %32, %33, %cst_31 {dimension_numbers = #tpu.dot_dimension_numbers<[1], [0], [0], [1], [0, 0, 1, 1], [], []>} : vector<32x128xbf16>, vector<128x128xbf16>, vector<32x128xf32> -> vector<32x128xf32>
    %c0_32 = arith.constant 0 : index
    %c0_33 = arith.constant 0 : index
    %35 = vector.load %arg8[%c0_32, %c0_33] : memref<1x128xf32, #tpu.memory_space<vmem>>, vector<1x128xf32>
    %36 = vector.broadcast %35 : vector<1x128xf32> to vector<32x128xf32>
    %37 = arith.addf %34, %36 : vector<32x128xf32>
    %38 = arith.truncf %37 : vector<32x128xf32> to vector<32x128xbf16>
    %c0_34 = arith.constant 0 : index
    %c0_35 = arith.constant 0 : index
    %39 = vector.load %arg9[%c0_34, %c0_35] : memref<128x512xbf16, #tpu.memory_space<vmem>>, vector<128x512xbf16>
    %cst_36 = arith.constant dense<0.000000e+00> : vector<32x512xf32>
    %40 = tpu.matmul %38, %39, %cst_36 {dimension_numbers = #tpu.dot_dimension_numbers<[1], [0], [0], [1], [0, 0, 1, 1], [], []>} : vector<32x128xbf16>, vector<128x512xbf16>, vector<32x512xf32> -> vector<32x512xf32>
    %c0_37 = arith.constant 0 : index
    %c0_38 = arith.constant 0 : index
    %41 = vector.load %arg10[%c0_37, %c0_38] : memref<1x512xf32, #tpu.memory_space<vmem>>, vector<1x512xf32>
    %42 = vector.broadcast %41 : vector<1x512xf32> to vector<32x512xf32>
    %43 = arith.addf %40, %42 : vector<32x512xf32>
    %44 = vector.shape_cast %43 : vector<32x512xf32> to vector<4x8x512xf32>
    %c0_39 = arith.constant 0 : index
    %c0_40 = arith.constant 0 : index
    %c0_41 = arith.constant 0 : index
    %45 = vector.load %arg13[%c0_39, %c0_40, %c0_41] : memref<4x8x512xf32, #tpu.memory_space<vmem>>, vector<4x8x512xf32>
    tpu.vector_store %arg13[%c0_39, %c0_40, %c0_41], %44 {strides = array<i32>} : memref<4x8x512xf32, #tpu.memory_space<vmem>>, vector<4x8x512xf32>,
    return
  }
  func.func @transform_0(%arg0: i32) -> (i32, i32, i32, i32) {
    %c0_i32 = arith.constant 0 : i32
    %c0_i32_0 = arith.constant 0 : i32
    %c0_i32_1 = arith.constant 0 : i32
    %c0_i32_2 = arith.constant 0 : i32
    return %arg0, %c0_i32, %c0_i32_0, %c0_i32_1 : i32, i32, i32, i32
  }
  func.func @transform_1(%arg0: i32) -> (i32, i32, i32) {
    %c0_i32 = arith.constant 0 : i32
    %c0_i32_0 = arith.constant 0 : i32
    %c0_i32_1 = arith.constant 0 : i32
    return %arg0, %c0_i32, %c0_i32_0 : i32, i32, i32
  }
  func.func @transform_2(%arg0: i32) -> (i32, i32) {
    %c0_i32 = arith.constant 0 : i32
    %c0_i32_0 = arith.constant 0 : i32
    %c0_i32_1 = arith.constant 0 : i32
    return %c0_i32, %c0_i32_0 : i32, i32
  }
  func.func @transform_3(%arg0: i32) -> (i32, i32) {
    %c0_i32 = arith.constant 0 : i32
    %c0_i32_0 = arith.constant 0 : i32
    %c0_i32_1 = arith.constant 0 : i32
    return %c0_i32, %c0_i32_0 : i32, i32
  }
  func.func @transform_4(%arg0: i32) -> (i32, i32) {
    %c0_i32 = arith.constant 0 : i32
    %c0_i32_0 = arith.constant 0 : i32
    %c0_i32_1 = arith.constant 0 : i32
    return %c0_i32, %c0_i32_0 : i32, i32
  }
  func.func @transform_5(%arg0: i32) -> (i32, i32) {
    %c0_i32 = arith.constant 0 : i32
    %c0_i32_0 = arith.constant 0 : i32
    %c0_i32_1 = arith.constant 0 : i32
    return %c0_i32, %c0_i32_0 : i32, i32
  }
  func.func @transform_6(%arg0: i32) -> (i32, i32) {
    %c0_i32 = arith.constant 0 : i32
    %c0_i32_0 = arith.constant 0 : i32
    %c0_i32_1 = arith.constant 0 : i32
    return %c0_i32, %c0_i32_0 : i32, i32
  }
  func.func @transform_7(%arg0: i32) -> (i32, i32) {
    %c0_i32 = arith.constant 0 : i32
    %c0_i32_0 = arith.constant 0 : i32
    %c0_i32_1 = arith.constant 0 : i32
    return %c0_i32, %c0_i32_0 : i32, i32
  }
  func.func @transform_8(%arg0: i32) -> (i32, i32) {
    %c0_i32 = arith.constant 0 : i32
    %c0_i32_0 = arith.constant 0 : i32
    %c0_i32_1 = arith.constant 0 : i32
    return %c0_i32, %c0_i32_0 : i32, i32
  }
  func.func @transform_9(%arg0: i32) -> (i32, i32) {
    %c0_i32 = arith.constant 0 : i32
    %c0_i32_0 = arith.constant 0 : i32
    %c0_i32_1 = arith.constant 0 : i32
    return %c0_i32, %c0_i32_0 : i32, i32
  }
  func.func @transform_10(%arg0: i32) -> (i32, i32, i32, i32) {
    %c0_i32 = arith.constant 0 : i32
    %c0_i32_0 = arith.constant 0 : i32
    %c0_i32_1 = arith.constant 0 : i32
    %c0_i32_2 = arith.constant 0 : i32
    return %arg0, %c0_i32, %c0_i32_0, %c0_i32_1 : i32, i32, i32, i32
  }
  func.func @transform_11(%arg0: i32) -> (i32, i32, i32, i32) {
    %c0_i32 = arith.constant 0 : i32
    %c0_i32_0 = arith.constant 0 : i32
    %c0_i32_1 = arith.constant 0 : i32
    %c0_i32_2 = arith.constant 0 : i32
    return %arg0, %c0_i32, %c0_i32_0, %c0_i32_1 : i32, i32, i32, i32
  }
  func.func @transform_12(%arg0: i32) -> (i32, i32, i32) {
    %c0_i32 = arith.constant 0 : i32
    %c0_i32_0 = arith.constant 0 : i32
    %c0_i32_1 = arith.constant 0 : i32
    return %arg0, %c0_i32, %c0_i32_0 : i32, i32, i32
  }
  func.func @transform_13(%arg0: i32) -> (i32, i32, i32) {
    %c0_i32 = arith.constant 0 : i32
    %c0_i32_0 = arith.constant 0 : i32
    %c0_i32_1 = arith.constant 0 : i32
    return %arg0, %c0_i32, %c0_i32_0 : i32, i32, i32
  }
}

</mosaic_0001>

<llo_original>
// kernel: tpu_custom_call.1
$region0: #{tpu_custom_call.1}
  #allocation0 [shape = 'u32[]', space=smem, size = 0x4, offset = 0x4, fixed_abs, tag = 'smem constant byte address 0x4 - core index']
  #allocation1 [shape = 'u32[72,128]{1,0:T(1,128)}', space=vmem, size = 0x9000, scoped, tag = 'internal scratch']
  %s0 = inlined_call_operand.hbm [shape: f32[8,8,8,256], index: 0, kind: input, shape index: {}]
  %s1 = inlined_call_operand.hbm [shape: f32[8,8,128], index: 1, kind: input, shape index: {}]
  %s2 = inlined_call_operand.hbm [shape: bf16[256,128], index: 2, kind: input, shape index: {}]
  %s3 = inlined_call_operand.vmem [shape: f32[1,128], index: 3, kind: input, shape index: {}]
  %s4 = inlined_call_operand.hbm [shape: bf16[128,128], index: 4, kind: input, shape index: {}]
  %s5 = inlined_call_operand.vmem [shape: f32[1,128], index: 5, kind: input, shape index: {}]
  %s6 = inlined_call_operand.hbm [shape: bf16[128,128], index: 6, kind: input, shape index: {}]
  %s7 = inlined_call_operand.vmem [shape: f32[1,128], index: 7, kind: input, shape index: {}]
  %s8 = inlined_call_operand.hbm [shape: bf16[128,512], index: 8, kind: input, shape index: {}]
  %s9 = inlined_call_operand.vmem [shape: f32[1,512], index: 9, kind: input, shape index: {}]
  %s10 = inlined_call_operand.hbm [shape: f32[8,8,8,128], index: 10, kind: output, shape index: {0}]
  %s11 = inlined_call_operand.hbm [shape: f32[8,8,8,128], index: 11, kind: output, shape index: {1}]
  %s12 = inlined_call_operand.hbm [shape: f32[8,8,512], index: 12, kind: output, shape index: {2}]
  %s13 = inlined_call_operand.hbm [shape: f32[8,8,8], index: 13, kind: output, shape index: {3}]
  %14 = xla_tuple %s10, %s11, %s12, %s13
  %s15 = sld [smem:[#allocation0]]
  $region121: #{tpu_custom_call.1} parent=0
    _
  %s17 = ssub.s32 1, %s15
  %s18 = scalar_select 0, %s17, %s15
  $region1: #{tpu_custom_call.1} parent=0
    #allocation2 [shape = 'u8[524288]{0}', space=vmem, size = 0x80000, scoped, tag = 'input window, operand 0']
    #allocation3 [shape = 's32[2]{0}', space=sflag, size = 0x8, scoped, tag = 'scoped memory for tpu_custom_call.1']
    #allocation4 [shape = 's32[2]{0}', space=sflag, size = 0x8, scoped, tag = 'scoped memory for tpu_custom_call.1']
    #allocation5 [shape = 'u8[32768]{0}', space=vmem, size = 0x8000, scoped, tag = 'input window, operand 1']
    #allocation6 [shape = 's32[2]{0}', space=sflag, size = 0x8, scoped, tag = 'scoped memory for tpu_custom_call.1']
    #allocation7 [shape = 'u8[65536]{0}', space=vmem, size = 0x10000, scoped, tag = 'input window, operand 2, single buffered']
    #allocation8 [shape = 'u8[32768]{0}', space=vmem, size = 0x8000, scoped, tag = 'input window, operand 4, single buffered']
    #allocation9 [shape = 's32[1]{0}', space=sflag, size = 0x4, scoped, tag = 'scoped memory for tpu_custom_call.1']
    #allocation10 [shape = 'u8[32768]{0}', space=vmem, size = 0x8000, scoped, tag = 'input window, operand 6, single buffered']
    #allocation11 [shape = 'u8[131072]{0}', space=vmem, size = 0x20000, scoped, tag = 'input window, operand 8, single buffered']
    #allocation12 [shape = 's32[1]{0}', space=sflag, size = 0x4, scoped, tag = 'scoped memory for tpu_custom_call.1']
    #allocation13 [shape = 'u8[262144]{0}', space=vmem, size = 0x40000, scoped, tag = 'output window, operand 0']
    #allocation14 [shape = 'u8[262144]{0}', space=vmem, size = 0x40000, scoped, tag = 'output window, operand 1']
    #allocation15 [shape = 's32[2]{0}', space=sflag, size = 0x8, scoped, tag = 'scoped memory for tpu_custom_call.1']
    #allocation16 [shape = 'u8[131072]{0}', space=vmem, size = 0x20000, scoped, tag = 'output window, operand 2']
    #allocation17 [shape = 'u8[32768]{0}', space=vmem, size = 0x8000, scoped, tag = 'output window, operand 3']
    #allocation18 [shape = 's32[2]{0}', space=sflag, size = 0x8, scoped, tag = 'scoped memory for tpu_custom_call.1']
    %19 = vsyncpa [#allocation3], 0
    %s20 = scalar_lea.sflag [#allocation3], 1
    %21 = vsyncpa %s20, 0
    %22 = vsyncpa [#allocation6], 0
    %s23 = scalar_lea.sflag [#allocation6], 1
    %24 = vsyncpa %s23, 0
    %25 = vsyncpa [#allocation9], 0
    %26 = vsyncpa [#allocation12], 0
    %27 = vsyncpa [#allocation4], 0
    %s28 = scalar_lea.sflag [#allocation4], 1
    %29 = vsyncpa %s28, 0
    %30 = vsyncpa [#allocation15], 0
    %s31 = scalar_lea.sflag [#allocation15], 1
    %32 = vsyncpa %s31, 0
    %33 = vsyncpa [#allocation18], 0
    %s34 = scalar_lea.sflag [#allocation18], 1
    %35 = vsyncpa %s34, 0
    loop: start=0, step=1, limit=4
    $region2: #{tpu_custom_call.1} parent=1 // loop_pre_header
      _
    $region3: #{tpu_custom_call.1} parent=1 // loop_header
      %s37 = sphi 0, %s41
      %p38 = scmp.ge.s32.totalorder %s37, 4
      %s47 = sphi 0, %s49
      %s50 = sphi 0, %s47
      %s51 = sphi 0, %s50
      %s67 = sphi 0, %s51
      %s73 = sphi 0, %s75
      %s76 = sphi 0, %s73
      %s77 = sphi 0, %s76
      %s93 = sphi 0, %s77
      %s97 = sphi 0, %s97
      %s99 = sphi 0, %s97
      %s100 = sphi 0, %s99
      %s114 = sphi 0, %s100
      %s118 = sphi 0, %s118
      %s120 = sphi 0, %s118
      %s121 = sphi 0, %s120
      %s135 = sphi 0, %s121
      %s139 = sphi 0, %s139
      %s141 = sphi 0, %s139
      %s142 = sphi 0, %s141
      %s156 = sphi 0, %s142
      %s160 = sphi 0, %s160
      %s162 = sphi 0, %s160
      %s163 = sphi 0, %s162
      %s177 = sphi 0, %s163
      %s181 = sphi 0, %s181
      %s183 = sphi 0, %s181
      %s184 = sphi 0, %s183
      %s198 = sphi 0, %s184
      %s202 = sphi 0, %s202
      %s204 = sphi 0, %s202
      %s205 = sphi 0, %s204
      %s219 = sphi 0, %s205
      %s223 = sphi 0, %s223
      %s225 = sphi 0, %s223
      %s226 = sphi 0, %s225
      %s240 = sphi 0, %s226
      %s244 = sphi 0, %s244
      %s246 = sphi 0, %s244
      %s247 = sphi 0, %s246
      %s261 = sphi 0, %s247
      %s267 = sphi 0, %s269
      %s270 = sphi 0, %s267
      %s271 = sphi 0, %s270
      %s287 = sphi 0, %s271
      %s293 = sphi 0, %s295
      %s296 = sphi 0, %s293
      %s297 = sphi 0, %s296
      %s313 = sphi 0, %s297
      %s319 = sphi 0, %s321
      %s322 = sphi 0, %s319
      %s323 = sphi 0, %s322
      %s339 = sphi 0, %s323
      %s345 = sphi 0, %s347
      %s348 = sphi 0, %s345
      %s349 = sphi 0, %s348
      %s365 = sphi 0, %s349
    $region4: #{tpu_custom_call.1} parent=1 // loop_header_branch
      %40 = sbr.rel (%p38) target = $region8
    $region5: #{tpu_custom_call.1} parent=1 // loop_body
      %s42 = ssub.s32 %s37, 1
      %s43 = ssub.s32 %s37, 2
      %s44 = sadd.s32 %s37, 1
      %s45 = ssub.s32 %s37, %s44
      %p46 = scmp.eq.s32.totalorder %s45, 0
      %s48 = sadd.s32 %s47, 1
      %s49 = scalar_select %p46, %s47, %s48
      %p52 = pneg %p46
      %p53 = scmp.eq.s32.totalorder %s37, 1
      %p54 = por %p52, %p53
      %p55 = scmp.ne.s32.totalorder %s47, %s50
      %p56 = scmp.eq.s32.totalorder %s37, 0
      %p57 = por %p55, %p56
      %p58 = scmp.ne.s32.totalorder %s47, %s50
      %p59 = scmp.eq.s32.totalorder %s42, 1
      %p60 = por %p58, %p59
      %p61 = scmp.ne.s32.totalorder %s50, %s51
      %p62 = scmp.eq.s32.totalorder %s42, 0
      %p63 = por %p61, %p62
      %p64 = scmp.ne.s32.totalorder %s50, %s51
      %p65 = scmp.eq.s32.totalorder %s43, 1
      %p66 = por %p64, %p65
      %p68 = scmp.ne.s32.totalorder %s51, %s67
      %p69 = scmp.eq.s32.totalorder %s43, 0
      %p70 = por %p68, %p69
      %s71 = ssub.s32 %s37, %s44
      %p72 = scmp.eq.s32.totalorder %s71, 0
      %s74 = sadd.s32 %s73, 1
      %s75 = scalar_select %p72, %s73, %s74
      %p78 = pneg %p72
      %p79 = scmp.eq.s32.totalorder %s37, 1
      %p80 = por %p78, %p79
      %p81 = scmp.ne.s32.totalorder %s73, %s76
      %p82 = scmp.eq.s32.totalorder %s37, 0
      %p83 = por %p81, %p82
      %p84 = scmp.ne.s32.totalorder %s73, %s76
      %p85 = scmp.eq.s32.totalorder %s42, 1
      %p86 = por %p84, %p85
      %p87 = scmp.ne.s32.totalorder %s76, %s77
      %p88 = scmp.eq.s32.totalorder %s42, 0
      %p89 = por %p87, %p88
      %p90 = scmp.ne.s32.totalorder %s76, %s77
      %p91 = scmp.eq.s32.totalorder %s43, 1
      %p92 = por %p90, %p91
      %p94 = scmp.ne.s32.totalorder %s77, %s93
      %p95 = scmp.eq.s32.totalorder %s43, 0
      %p96 = por %p94, %p95
      %s98 = sadd.s32 %s97, 1
      %p101 = scmp.eq.s32.totalorder %s37, 1
      %p102 = scmp.ne.s32.totalorder %s97, %s99
      %p103 = scmp.eq.s32.totalorder %s37, 0
      %p104 = por %p102, %p103
      %p105 = scmp.ne.s32.totalorder %s97, %s99
      %p106 = scmp.eq.s32.totalorder %s42, 1
      %p107 = por %p105, %p106
      %p108 = scmp.ne.s32.totalorder %s99, %s100
      %p109 = scmp.eq.s32.totalorder %s42, 0
      %p110 = por %p108, %p109
      %p111 = scmp.ne.s32.totalorder %s99, %s100
      %p112 = scmp.eq.s32.totalorder %s43, 1
      %p113 = por %p111, %p112
      %p115 = scmp.ne.s32.totalorder %s100, %s114
      %p116 = scmp.eq.s32.totalorder %s43, 0
      %p117 = por %p115, %p116
      %s119 = sadd.s32 %s118, 1
      %p122 = scmp.eq.s32.totalorder %s37, 1
      %p123 = scmp.ne.s32.totalorder %s118, %s120
      %p124 = scmp.eq.s32.totalorder %s37, 0
      %p125 = por %p123, %p124
      %p126 = scmp.ne.s32.totalorder %s118, %s120
      %p127 = scmp.eq.s32.totalorder %s42, 1
      %p128 = por %p126, %p127
      %p129 = scmp.ne.s32.totalorder %s120, %s121
      %p130 = scmp.eq.s32.totalorder %s42, 0
      %p131 = por %p129, %p130
      %p132 = scmp.ne.s32.totalorder %s120, %s121
      %p133 = scmp.eq.s32.totalorder %s43, 1
      %p134 = por %p132, %p133
      %p136 = scmp.ne.s32.totalorder %s121, %s135
      %p137 = scmp.eq.s32.totalorder %s43, 0
      %p138 = por %p136, %p137
      %s140 = sadd.s32 %s139, 1
      %p143 = scmp.eq.s32.totalorder %s37, 1
      %p144 = scmp.ne.s32.totalorder %s139, %s141
      %p145 = scmp.eq.s32.totalorder %s37, 0
      %p146 = por %p144, %p145
      %p147 = scmp.ne.s32.totalorder %s139, %s141
      %p148 = scmp.eq.s32.totalorder %s42, 1
      %p149 = por %p147, %p148
      %p150 = scmp.ne.s32.totalorder %s141, %s142
      %p151 = scmp.eq.s32.totalorder %s42, 0
      %p152 = por %p150, %p151
      %p153 = scmp.ne.s32.totalorder %s141, %s142
      %p154 = scmp.eq.s32.totalorder %s43, 1
      %p155 = por %p153, %p154
      %p157 = scmp.ne.s32.totalorder %s142, %s156
      %p158 = scmp.eq.s32.totalorder %s43, 0
      %p159 = por %p157, %p158
      %s161 = sadd.s32 %s160, 1
      %p164 = scmp.eq.s32.totalorder %s37, 1
      %p165 = scmp.ne.s32.totalorder %s160, %s162
      %p166 = scmp.eq.s32.totalorder %s37, 0
      %p167 = por %p165, %p166
      %p168 = scmp.ne.s32.totalorder %s160, %s162
      %p169 = scmp.eq.s32.totalorder %s42, 1
      %p170 = por %p168, %p169
      %p171 = scmp.ne.s32.totalorder %s162, %s163
      %p172 = scmp.eq.s32.totalorder %s42, 0
      %p173 = por %p171, %p172
      %p174 = scmp.ne.s32.totalorder %s162, %s163
      %p175 = scmp.eq.s32.totalorder %s43, 1
      %p176 = por %p174, %p175
      %p178 = scmp.ne.s32.totalorder %s163, %s177
      %p179 = scmp.eq.s32.totalorder %s43, 0
      %p180 = por %p178, %p179
      %s182 = sadd.s32 %s181, 1
      %p185 = scmp.eq.s32.totalorder %s37, 1
      %p186 = scmp.ne.s32.totalorder %s181, %s183
      %p187 = scmp.eq.s32.totalorder %s37, 0
      %p188 = por %p186, %p187
      %p189 = scmp.ne.s32.totalorder %s181, %s183
      %p190 = scmp.eq.s32.totalorder %s42, 1
      %p191 = por %p189, %p190
      %p192 = scmp.ne.s32.totalorder %s183, %s184
      %p193 = scmp.eq.s32.totalorder %s42, 0
      %p194 = por %p192, %p193
      %p195 = scmp.ne.s32.totalorder %s183, %s184
      %p196 = scmp.eq.s32.totalorder %s43, 1
      %p197 = por %p195, %p196
      %p199 = scmp.ne.s32.totalorder %s184, %s198
      %p200 = scmp.eq.s32.totalorder %s43, 0
      %p201 = por %p199, %p200
      %s203 = sadd.s32 %s202, 1
      %p206 = scmp.eq.s32.totalorder %s37, 1
      %p207 = scmp.ne.s32.totalorder %s202, %s204
      %p208 = scmp.eq.s32.totalorder %s37, 0
      %p209 = por %p207, %p208
      %p210 = scmp.ne.s32.totalorder %s202, %s204
      %p211 = scmp.eq.s32.totalorder %s42, 1
      %p212 = por %p210, %p211
      %p213 = scmp.ne.s32.totalorder %s204, %s205
      %p214 = scmp.eq.s32.totalorder %s42, 0
      %p215 = por %p213, %p214
      %p216 = scmp.ne.s32.totalorder %s204, %s205
      %p217 = scmp.eq.s32.totalorder %s43, 1
      %p218 = por %p216, %p217
      %p220 = scmp.ne.s32.totalorder %s205, %s219
      %p221 = scmp.eq.s32.totalorder %s43, 0
      %p222 = por %p220, %p221
      %s224 = sadd.s32 %s223, 1
      %p227 = scmp.eq.s32.totalorder %s37, 1
      %p228 = scmp.ne.s32.totalorder %s223, %s225
      %p229 = scmp.eq.s32.totalorder %s37, 0
      %p230 = por %p228, %p229
      %p231 = scmp.ne.s32.totalorder %s223, %s225
      %p232 = scmp.eq.s32.totalorder %s42, 1
      %p233 = por %p231, %p232
      %p234 = scmp.ne.s32.totalorder %s225, %s226
      %p235 = scmp.eq.s32.totalorder %s42, 0
      %p236 = por %p234, %p235
      %p237 = scmp.ne.s32.totalorder %s225, %s226
      %p238 = scmp.eq.s32.totalorder %s43, 1
      %p239 = por %p237, %p238
      %p241 = scmp.ne.s32.totalorder %s226, %s240
      %p242 = scmp.eq.s32.totalorder %s43, 0
      %p243 = por %p241, %p242
      %s245 = sadd.s32 %s244, 1
      %p248 = scmp.eq.s32.totalorder %s37, 1
      %p249 = scmp.ne.s32.totalorder %s244, %s246
      %p250 = scmp.eq.s32.totalorder %s37, 0
      %p251 = por %p249, %p250
      %p252 = scmp.ne.s32.totalorder %s244, %s246
      %p253 = scmp.eq.s32.totalorder %s42, 1
      %p254 = por %p252, %p253
      %p255 = scmp.ne.s32.totalorder %s246, %s247
      %p256 = scmp.eq.s32.totalorder %s42, 0
      %p257 = por %p255, %p256
      %p258 = scmp.ne.s32.totalorder %s246, %s247
      %p259 = scmp.eq.s32.totalorder %s43, 1
      %p260 = por %p258, %p259
      %p262 = scmp.ne.s32.totalorder %s247, %s261
      %p263 = scmp.eq.s32.totalorder %s43, 0
      %p264 = por %p262, %p263
      %s265 = ssub.s32 %s37, %s44
      %p266 = scmp.eq.s32.totalorder %s265, 0
      %s268 = sadd.s32 %s267, 1
      %s269 = scalar_select %p266, %s267, %s268
      %p272 = pneg %p266
      %p273 = scmp.eq.s32.totalorder %s37, 1
      %p274 = por %p272, %p273
      %p275 = scmp.ne.s32.totalorder %s267, %s270
      %p276 = scmp.eq.s32.totalorder %s37, 0
      %p277 = por %p275, %p276
      %p278 = scmp.ne.s32.totalorder %s267, %s270
      %p279 = scmp.eq.s32.totalorder %s42, 1
      %p280 = por %p278, %p279
      %p281 = scmp.ne.s32.totalorder %s270, %s271
      %p282 = scmp.eq.s32.totalorder %s42, 0
      %p283 = por %p281, %p282
      %p284 = scmp.ne.s32.totalorder %s270, %s271
      %p285 = scmp.eq.s32.totalorder %s43, 1
      %p286 = por %p284, %p285
      %p288 = scmp.ne.s32.totalorder %s271, %s287
      %p289 = scmp.eq.s32.totalorder %s43, 0
      %p290 = por %p288, %p289
      %s291 = ssub.s32 %s37, %s44
      %p292 = scmp.eq.s32.totalorder %s291, 0
      %s294 = sadd.s32 %s293, 1
      %s295 = scalar_select %p292, %s293, %s294
      %p298 = pneg %p292
      %p299 = scmp.eq.s32.totalorder %s37, 1
      %p300 = por %p298, %p299
      %p301 = scmp.ne.s32.totalorder %s293, %s296
      %p302 = scmp.eq.s32.totalorder %s37, 0
      %p303 = por %p301, %p302
      %p304 = scmp.ne.s32.totalorder %s293, %s296
      %p305 = scmp.eq.s32.totalorder %s42, 1
      %p306 = por %p304, %p305
      %p307 = scmp.ne.s32.totalorder %s296, %s297
      %p308 = scmp.eq.s32.totalorder %s42, 0
      %p309 = por %p307, %p308
      %p310 = scmp.ne.s32.totalorder %s296, %s297
      %p311 = scmp.eq.s32.totalorder %s43, 1
      %p312 = por %p310, %p311
      %p314 = scmp.ne.s32.totalorder %s297, %s313
      %p315 = scmp.eq.s32.totalorder %s43, 0
      %p316 = por %p314, %p315
      %s317 = ssub.s32 %s37, %s44
      %p318 = scmp.eq.s32.totalorder %s317, 0
      %s320 = sadd.s32 %s319, 1
      %s321 = scalar_select %p318, %s319, %s320
      %p324 = pneg %p318
      %p325 = scmp.eq.s32.totalorder %s37, 1
      %p326 = por %p324, %p325
      %p327 = scmp.ne.s32.totalorder %s319, %s322
      %p328 = scmp.eq.s32.totalorder %s37, 0
      %p329 = por %p327, %p328
      %p330 = scmp.ne.s32.totalorder %s319, %s322
      %p331 = scmp.eq.s32.totalorder %s42, 1
      %p332 = por %p330, %p331
      %p333 = scmp.ne.s32.totalorder %s322, %s323
      %p334 = scmp.eq.s32.totalorder %s42, 0
      %p335 = por %p333, %p334
      %p336 = scmp.ne.s32.totalorder %s322, %s323
      %p337 = scmp.eq.s32.totalorder %s43, 1
      %p338 = por %p336, %p337
      %p340 = scmp.ne.s32.totalorder %s323, %s339
      %p341 = scmp.eq.s32.totalorder %s43, 0
      %p342 = por %p340, %p341
      %s343 = ssub.s32 %s37, %s44
      %p344 = scmp.eq.s32.totalorder %s343, 0
      %s346 = sadd.s32 %s345, 1
      %s347 = scalar_select %p344, %s345, %s346
      %p350 = pneg %p344
      %p351 = scmp.eq.s32.totalorder %s37, 1
      %p352 = por %p350, %p351
      %p353 = scmp.ne.s32.totalorder %s345, %s348
      %p354 = scmp.eq.s32.totalorder %s37, 0
      %p355 = por %p353, %p354
      %p356 = scmp.ne.s32.totalorder %s345, %s348
      %p357 = scmp.eq.s32.totalorder %s42, 1
      %p358 = por %p356, %p357
      %p359 = scmp.ne.s32.totalorder %s348, %s349
      %p360 = scmp.eq.s32.totalorder %s42, 0
      %p361 = por %p359, %p360
      %p362 = scmp.ne.s32.totalorder %s348, %s349
      %p363 = scmp.eq.s32.totalorder %s43, 1
      %p364 = por %p362, %p363
      %p366 = scmp.ne.s32.totalorder %s349, %s365
      %p367 = scmp.eq.s32.totalorder %s43, 0
      %p368 = por %p366, %p367
      %p369 = scmp.le.s32.totalorder 1, %s37
      %p370 = scmp.lt.s32.totalorder %s37, 3
      %p371 = pnand %p369, %p370
      %p372 = pneg %p371
      // Predicated region
      $region9: #{tpu_custom_call.1} parent=5 // pred_check
        _
      $region10: #{tpu_custom_call.1} parent=5 // pred_check_branch
        %374 = sbr.rel (%p371) target = $region12
      $region11: #{tpu_custom_call.1} parent=5 // pred_region
        %s375 = ssub.s32 %s37, 1
        // Predicated region
        $region13: #{tpu_custom_call.1} parent=11 // pred_check
          %p376 = pneg %p110
        $region14: #{tpu_custom_call.1} parent=11 // pred_check_branch
          %378 = sbr.rel (%p376) target = $region16
        $region15: #{tpu_custom_call.1} parent=11 // pred_region
          %380 = vsyncadd [#allocation6], 0
          %s381 = sshll.u32 %s2, 4
          %s382 = int_to_ptr.hbm [resolvable:$true] %s381
          %s383 = sshll.u32 [#allocation7], 4
          %s384 = int_to_ptr.vmem [resolvable:$true] %s383
          %389 = dma.hbm_to_vmem [thread:$0]  %s382, 2048, %s384, [#allocation6], 64, 64, 4
        $region16: #{tpu_custom_call.1} parent=11 // pred_fallthru
          _
        // Predicated region
        $region17: #{tpu_custom_call.1} parent=11 // pred_check
          %p390 = pneg %p131
        $region18: #{tpu_custom_call.1} parent=11 // pred_check_branch
          %392 = sbr.rel (%p390) target = $region20
        $region19: #{tpu_custom_call.1} parent=11 // pred_region
          _
        $region20: #{tpu_custom_call.1} parent=11 // pred_fallthru
          _
        // Predicated region
        $region21: #{tpu_custom_call.1} parent=11 // pred_check
          %p393 = pneg %p152
        $region22: #{tpu_custom_call.1} parent=11 // pred_check_branch
          %395 = sbr.rel (%p393) target = $region24
        $region23: #{tpu_custom_call.1} parent=11 // pred_region
          %397 = vsyncadd [#allocation9], 0
          %s398 = sshll.u32 %s4, 4
          %s399 = int_to_ptr.hbm [resolvable:$true] %s398
          %s400 = sshll.u32 [#allocation8], 4
          %s401 = int_to_ptr.vmem [resolvable:$true] %s400
          %406 = dma.hbm_to_vmem [thread:$0]  %s399, 1024, %s401, [#allocation9], 64, 64, 4
        $region24: #{tpu_custom_call.1} parent=11 // pred_fallthru
          _
        // Predicated region
        $region25: #{tpu_custom_call.1} parent=11 // pred_check
          %p407 = pneg %p173
        $region26: #{tpu_custom_call.1} parent=11 // pred_check_branch
          %409 = sbr.rel (%p407) target = $region28
        $region27: #{tpu_custom_call.1} parent=11 // pred_region
          _
        $region28: #{tpu_custom_call.1} parent=11 // pred_fallthru
          _
        // Predicated region
        $region29: #{tpu_custom_call.1} parent=11 // pred_check
          %p410 = pneg %p194
        $region30: #{tpu_custom_call.1} parent=11 // pred_check_branch
          %412 = sbr.rel (%p410) target = $region32
        $region31: #{tpu_custom_call.1} parent=11 // pred_region
          %414 = vsyncadd [#allocation9], 0
          %s415 = sshll.u32 %s6, 4
          %s416 = int_to_ptr.hbm [resolvable:$true] %s415
          %s417 = sshll.u32 [#allocation10], 4
          %s418 = int_to_ptr.vmem [resolvable:$true] %s417
          %423 = dma.hbm_to_vmem [thread:$0]  %s416, 1024, %s418, [#allocation9], 64, 64, 4
        $region32: #{tpu_custom_call.1} parent=11 // pred_fallthru
          _
        // Predicated region
        $region33: #{tpu_custom_call.1} parent=11 // pred_check
          %p424 = pneg %p215
        $region34: #{tpu_custom_call.1} parent=11 // pred_check_branch
          %426 = sbr.rel (%p424) target = $region36
        $region35: #{tpu_custom_call.1} parent=11 // pred_region
          _
        $region36: #{tpu_custom_call.1} parent=11 // pred_fallthru
          _
        // Predicated region
        $region37: #{tpu_custom_call.1} parent=11 // pred_check
          %p427 = pneg %p236
        $region38: #{tpu_custom_call.1} parent=11 // pred_check_branch
          %429 = sbr.rel (%p427) target = $region40
        $region39: #{tpu_custom_call.1} parent=11 // pred_region
          %431 = vsyncadd [#allocation12], 0
          %s432 = sshll.u32 %s8, 4
          %s433 = int_to_ptr.hbm [resolvable:$true] %s432
          %s434 = sshll.u32 [#allocation11], 4
          %s435 = int_to_ptr.vmem [resolvable:$true] %s434
          %440 = dma.hbm_to_vmem [thread:$0]  %s433, 4096, %s435, [#allocation12], 256, 256, 16
        $region40: #{tpu_custom_call.1} parent=11 // pred_fallthru
          _
        // Predicated region
        $region41: #{tpu_custom_call.1} parent=11 // pred_check
          %p441 = pneg %p257
        $region42: #{tpu_custom_call.1} parent=11 // pred_check_branch
          %443 = sbr.rel (%p441) target = $region44
        $region43: #{tpu_custom_call.1} parent=11 // pred_region
          _
        $region44: #{tpu_custom_call.1} parent=11 // pred_fallthru
          _
      $region12: #{tpu_custom_call.1} parent=5 // pred_fallthru
        _
      %p444 = scmp.lt.s32.totalorder %s37, 2
      // Predicated region
      $region45: #{tpu_custom_call.1} parent=5 // pred_check
        %p445 = pneg %p444
      $region46: #{tpu_custom_call.1} parent=5 // pred_check_branch
        %447 = sbr.rel (%p445) target = $region48
      $region47: #{tpu_custom_call.1} parent=5 // pred_region
        // Predicated region
        $region49: #{tpu_custom_call.1} parent=47 // pred_check
          %p448 = pneg %p57
        $region50: #{tpu_custom_call.1} parent=47 // pred_check_branch
          %450 = sbr.rel (%p448) target = $region52
        $region51: #{tpu_custom_call.1} parent=47 // pred_region
          %s451 = sand.u32 %s47, 1
          %s452 = scalar_lea.sflag [#allocation3], %s451
          %s453 = sand.u32 %s47, 1
          %s454 = smul.addr %s453, 512
          %s455 = scalar_lea.vmem [#allocation2], %s454
          %s456 = smul.u32 4, %s37
          %458 = vsyncadd %s452, 0
          %s459 = smul.addr %s456, 16
          %s460 = smul.addr %s459, 8
          %s461 = scalar_lea.hbm %s0, %s460
          %s462 = sshll.u32 %s461, 4
          %s463 = int_to_ptr.hbm [resolvable:$true] %s462
          %s464 = sshll.u32 %s455, 4
          %s465 = int_to_ptr.vmem [resolvable:$true] %s464
          %470 = dma.hbm_to_vmem [thread:$0]  %s463, 8192, %s465, %s452, 256, 256, 16
        $region52: #{tpu_custom_call.1} parent=47 // pred_fallthru
          _
        // Predicated region
        $region53: #{tpu_custom_call.1} parent=47 // pred_check
          %p471 = pneg %p83
        $region54: #{tpu_custom_call.1} parent=47 // pred_check_branch
          %473 = sbr.rel (%p471) target = $region56
        $region55: #{tpu_custom_call.1} parent=47 // pred_region
          %s474 = sand.u32 %s37, 1
          %s475 = scalar_lea.sflag [#allocation6], %s474
          %s476 = sand.u32 %s73, 1
          %s477 = smul.addr %s476, 32
          %s478 = scalar_lea.vmem [#allocation5], %s477
          %s479 = smul.u32 4, %s37
          %481 = vsyncadd %s475, 0
          %s482 = smul.addr %s479, 8
          %s483 = scalar_lea.hbm %s1, %s482
          %s484 = sshll.u32 %s483, 4
          %s485 = int_to_ptr.hbm [resolvable:$true] %s484
          %s486 = sshll.u32 %s478, 4
          %s487 = int_to_ptr.vmem [resolvable:$true] %s486
          %492 = dma.hbm_to_vmem [thread:$0]  %s485, 512, %s487, %s475, 128, 128, 8
        $region56: #{tpu_custom_call.1} parent=47 // pred_fallthru
          _
      $region48: #{tpu_custom_call.1} parent=5 // pred_fallthru
        _
      %p493 = scmp.le.s32.totalorder 1, %s37
      %p494 = scmp.lt.s32.totalorder %s37, 3
      %p495 = pnand %p493, %p494
      %p496 = pneg %p495
      // Predicated region
      $region57: #{tpu_custom_call.1} parent=5 // pred_check
        _
      $region58: #{tpu_custom_call.1} parent=5 // pred_check_branch
        %498 = sbr.rel (%p495) target = $region60
      $region59: #{tpu_custom_call.1} parent=5 // pred_region
        %s499 = ssub.s32 %s37, 1
        %s500 = sand.u32 %s50, 1
        %s501 = scalar_lea.sflag [#allocation3], %s500
        %s502 = sand.u32 %s50, 1
        %s503 = smul.addr %s502, 512
        %s504 = scalar_lea.vmem [#allocation2], %s503
        // Predicated region
        $region61: #{tpu_custom_call.1} parent=59 // pred_check
          %p505 = pneg %p63
        $region62: #{tpu_custom_call.1} parent=59 // pred_check_branch
          %507 = sbr.rel (%p505) target = $region64
        $region63: #{tpu_custom_call.1} parent=59 // pred_region
          %509 = dma.done %s501, 8192
        $region64: #{tpu_custom_call.1} parent=59 // pred_fallthru
          _
        %s510 = sand.u32 %s42, 1
        %s511 = scalar_lea.sflag [#allocation6], %s510
        %s512 = sand.u32 %s76, 1
        %s513 = smul.addr %s512, 32
        %s514 = scalar_lea.vmem [#allocation5], %s513
        // Predicated region
        $region65: #{tpu_custom_call.1} parent=59 // pred_check
          %p515 = pneg %p89
        $region66: #{tpu_custom_call.1} parent=59 // pred_check_branch
          %517 = sbr.rel (%p515) target = $region68
        $region67: #{tpu_custom_call.1} parent=59 // pred_region
          %519 = dma.done %s511, 512
        $region68: #{tpu_custom_call.1} parent=59 // pred_fallthru
          _
        // Predicated region
        $region69: #{tpu_custom_call.1} parent=59 // pred_check
          %p520 = pneg %p110
        $region70: #{tpu_custom_call.1} parent=59 // pred_check_branch
          %522 = sbr.rel (%p520) target = $region72
        $region71: #{tpu_custom_call.1} parent=59 // pred_region
          %524 = dma.done [#allocation6], 2048
        $region72: #{tpu_custom_call.1} parent=59 // pred_fallthru
          _
        // Predicated region
        $region73: #{tpu_custom_call.1} parent=59 // pred_check
          %p525 = pneg %p152
        $region74: #{tpu_custom_call.1} parent=59 // pred_check_branch
          %527 = sbr.rel (%p525) target = $region76
        $region75: #{tpu_custom_call.1} parent=59 // pred_region
          %529 = dma.done [#allocation9], 1024
        $region76: #{tpu_custom_call.1} parent=59 // pred_fallthru
          _
        // Predicated region
        $region77: #{tpu_custom_call.1} parent=59 // pred_check
          %p530 = pneg %p194
        $region78: #{tpu_custom_call.1} parent=59 // pred_check_branch
          %532 = sbr.rel (%p530) target = $region80
        $region79: #{tpu_custom_call.1} parent=59 // pred_region
          %534 = dma.done [#allocation9], 1024
        $region80: #{tpu_custom_call.1} parent=59 // pred_fallthru
          _
        // Predicated region
        $region81: #{tpu_custom_call.1} parent=59 // pred_check
          %p535 = pneg %p236
        $region82: #{tpu_custom_call.1} parent=59 // pred_check_branch
          %537 = sbr.rel (%p535) target = $region84
        $region83: #{tpu_custom_call.1} parent=59 // pred_region
          %539 = dma.done [#allocation12], 4096
        $region84: #{tpu_custom_call.1} parent=59 // pred_fallthru
          _
        %s540 = sand.u32 %s50, 1
        %s541 = scalar_lea.sflag [#allocation3], %s540
        %s542 = sand.u32 %s50, 1
        %s543 = smul.addr %s542, 512
        %s544 = scalar_lea.vmem [#allocation2], %s543
        %p545 = pneg %p63
        %p546 = pneg %p60
        %s547 = sand.u32 %s42, 1
        %s548 = scalar_lea.sflag [#allocation6], %s547
        %s549 = sand.u32 %s76, 1
        %s550 = smul.addr %s549, 32
        %s551 = scalar_lea.vmem [#allocation5], %s550
        %p552 = pneg %p89
        %p553 = pneg %p86
        %p554 = pneg %p110
        %p555 = pneg %p107
        %p556 = pneg %p131
        %p557 = pneg %p128
        %p558 = pneg %p152
        %p559 = pneg %p149
        %p560 = pneg %p173
        %p561 = pneg %p170
        %p562 = pneg %p194
        %p563 = pneg %p191
        %p564 = pneg %p215
        %p565 = pneg %p212
        %p566 = pneg %p236
        %p567 = pneg %p233
        %p568 = pneg %p257
        %p569 = pneg %p254
        %p570 = pneg %p283
        %p571 = pneg %p280
        %s572 = sand.u32 %s270, 1
        %s573 = scalar_lea.sflag [#allocation4], %s572
        %s574 = sand.u32 %s270, 1
        %s575 = smul.addr %s574, 256
        %s576 = scalar_lea.vmem [#allocation13], %s575
        %p577 = pneg %p309
        %p578 = pneg %p306
        %s579 = sand.u32 %s42, 1
        %s580 = scalar_lea.sflag [#allocation15], %s579
        %s581 = sand.u32 %s296, 1
        %s582 = smul.addr %s581, 256
        %s583 = scalar_lea.vmem [#allocation14], %s582
        %p584 = pneg %p335
        %p585 = pneg %p332
        %s586 = sand.u32 %s42, 1
        %s587 = scalar_lea.sflag [#allocation15], %s586
        %s588 = sand.u32 %s322, 1
        %s589 = smul.addr %s588, 128
        %s590 = scalar_lea.vmem [#allocation16], %s589
        %p591 = pneg %p361
        %p592 = pneg %p358
        %s593 = sand.u32 %s348, 1
        %s594 = scalar_lea.sflag [#allocation18], %s593
        %s595 = sand.u32 %s348, 1
        %s596 = smul.addr %s595, 32
        %s597 = scalar_lea.vmem [#allocation17], %s596
        %s598 = smul.u32 4, %s42
        %s599 = smul.u32 4, %s42
        %s600 = smul.u32 4, %s42
        %s601 = smul.u32 4, %s42
        %s602 = smul.u32 4, %s42
        %s603 = smul.u32 4, %s42
        %v604 = vld [vmem:[%s504] sm:$0xff]
        %v605 = vld [vmem:[%s504 + $0x8] sm:$0xff]
        %v606 = vld [vmem:[%s504 + $0x10] sm:$0xff]
        %v607 = vld [vmem:[%s504 + $0x18] sm:$0xff]
        %v608 = vld [vmem:[%s504 + $0x20] sm:$0xff]
        %v609 = vld [vmem:[%s504 + $0x28] sm:$0xff]
        %v610 = vld [vmem:[%s504 + $0x30] sm:$0xff]
        %v611 = vld [vmem:[%s504 + $0x38] sm:$0xff]
        %v612 = vld [vmem:[%s504 + $0x40] sm:$0xff]
        %v613 = vld [vmem:[%s504 + $0x48] sm:$0xff]
        %v614 = vld [vmem:[%s504 + $0x50] sm:$0xff]
        %v615 = vld [vmem:[%s504 + $0x58] sm:$0xff]
        %v616 = vld [vmem:[%s504 + $0x60] sm:$0xff]
        %v617 = vld [vmem:[%s504 + $0x68] sm:$0xff]
        %v618 = vld [vmem:[%s504 + $0x70] sm:$0xff]
        %v619 = vld [vmem:[%s504 + $0x78] sm:$0xff]
        %v620 = vld [vmem:[%s504 + $0x80] sm:$0xff]
        %v621 = vld [vmem:[%s504 + $0x88] sm:$0xff]
        %v622 = vld [vmem:[%s504 + $0x90] sm:$0xff]
        %v623 = vld [vmem:[%s504 + $0x98] sm:$0xff]
        %v624 = vld [vmem:[%s504 + $0xa0] sm:$0xff]
        %v625 = vld [vmem:[%s504 + $0xa8] sm:$0xff]
        %v626 = vld [vmem:[%s504 + $0xb0] sm:$0xff]
        %v627 = vld [vmem:[%s504 + $0xb8] sm:$0xff]
        %v628 = vld [vmem:[%s504 + $0xc0] sm:$0xff]
        %v629 = vld [vmem:[%s504 + $0xc8] sm:$0xff]
        %v630 = vld [vmem:[%s504 + $0xd0] sm:$0xff]
        %v631 = vld [vmem:[%s504 + $0xd8] sm:$0xff]
        %v632 = vld [vmem:[%s504 + $0xe0] sm:$0xff]
        %v633 = vld [vmem:[%s504 + $0xe8] sm:$0xff]
        %v634 = vld [vmem:[%s504 + $0xf0] sm:$0xff]
        %v635 = vld [vmem:[%s504 + $0xf8] sm:$0xff]
        %v636 = vld [vmem:[%s504 + $0x100] sm:$0xff]
        %v637 = vld [vmem:[%s504 + $0x108] sm:$0xff]
        %v638 = vld [vmem:[%s504 + $0x110] sm:$0xff]
        %v639 = vld [vmem:[%s504 + $0x118] sm:$0xff]
        %v640 = vld [vmem:[%s504 + $0x120] sm:$0xff]
        %v641 = vld [vmem:[%s504 + $0x128] sm:$0xff]
        %v642 = vld [vmem:[%s504 + $0x130] sm:$0xff]
        %v643 = vld [vmem:[%s504 + $0x138] sm:$0xff]
        %v644 = vld [vmem:[%s504 + $0x140] sm:$0xff]
        %v645 = vld [vmem:[%s504 + $0x148] sm:$0xff]
        %v646 = vld [vmem:[%s504 + $0x150] sm:$0xff]
        %v647 = vld [vmem:[%s504 + $0x158] sm:$0xff]
        %v648 = vld [vmem:[%s504 + $0x160] sm:$0xff]
        %v649 = vld [vmem:[%s504 + $0x168] sm:$0xff]
        %v650 = vld [vmem:[%s504 + $0x170] sm:$0xff]
        %v651 = vld [vmem:[%s504 + $0x178] sm:$0xff]
        %v652 = vld [vmem:[%s504 + $0x180] sm:$0xff]
        %v653 = vld [vmem:[%s504 + $0x188] sm:$0xff]
        %v654 = vld [vmem:[%s504 + $0x190] sm:$0xff]
        %v655 = vld [vmem:[%s504 + $0x198] sm:$0xff]
        %v656 = vld [vmem:[%s504 + $0x1a0] sm:$0xff]
        %v657 = vld [vmem:[%s504 + $0x1a8] sm:$0xff]
        %v658 = vld [vmem:[%s504 + $0x1b0] sm:$0xff]
        %v659 = vld [vmem:[%s504 + $0x1b8] sm:$0xff]
        %v660 = vld [vmem:[%s504 + $0x1c0] sm:$0xff]
        %v661 = vld [vmem:[%s504 + $0x1c8] sm:$0xff]
        %v662 = vld [vmem:[%s504 + $0x1d0] sm:$0xff]
        %v663 = vld [vmem:[%s504 + $0x1d8] sm:$0xff]
        %v664 = vld [vmem:[%s504 + $0x1e0] sm:$0xff]
        %v665 = vld [vmem:[%s504 + $0x1e8] sm:$0xff]
        %v666 = vld [vmem:[%s504 + $0x1f0] sm:$0xff]
        %v667 = vld [vmem:[%s504 + $0x1f8] sm:$0xff]
        %v668 = vadd.f32 %v604, %v605
        %669 = vadd.xlane.f32.xlu0 %v668
        %v670 = vpop.xlane.xlu0 %669
        %v671 = vadd.f32 %v606, %v607
        %672 = vadd.xlane.f32.xlu0 %v671
        %v673 = vpop.xlane.xlu0 %672
        %v674 = vadd.f32 %v608, %v609
        %675 = vadd.xlane.f32.xlu0 %v674
        %v676 = vpop.xlane.xlu0 %675
        %v677 = vadd.f32 %v610, %v611
        %678 = vadd.xlane.f32.xlu0 %v677
        %v679 = vpop.xlane.xlu0 %678
        %v680 = vadd.f32 %v612, %v613
        %681 = vadd.xlane.f32.xlu0 %v680
        %v682 = vpop.xlane.xlu0 %681
        %v683 = vadd.f32 %v614, %v615
        %684 = vadd.xlane.f32.xlu0 %v683
        %v685 = vpop.xlane.xlu0 %684
        %v686 = vadd.f32 %v616, %v617
        %687 = vadd.xlane.f32.xlu0 %v686
        %v688 = vpop.xlane.xlu0 %687
        %v689 = vadd.f32 %v618, %v619
        %690 = vadd.xlane.f32.xlu0 %v689
        %v691 = vpop.xlane.xlu0 %690
        %v692 = vadd.f32 %v620, %v621
        %693 = vadd.xlane.f32.xlu0 %v692
        %v694 = vpop.xlane.xlu0 %693
        %v695 = vadd.f32 %v622, %v623
        %696 = vadd.xlane.f32.xlu0 %v695
        %v697 = vpop.xlane.xlu0 %696
        %v698 = vadd.f32 %v624, %v625
        %699 = vadd.xlane.f32.xlu0 %v698
        %v700 = vpop.xlane.xlu0 %699
        %v701 = vadd.f32 %v626, %v627
        %702 = vadd.xlane.f32.xlu0 %v701
        %v703 = vpop.xlane.xlu0 %702
        %v704 = vadd.f32 %v628, %v629
        %705 = vadd.xlane.f32.xlu0 %v704
        %v706 = vpop.xlane.xlu0 %705
        %v707 = vadd.f32 %v630, %v631
        %708 = vadd.xlane.f32.xlu0 %v707
        %v709 = vpop.xlane.xlu0 %708
        %v710 = vadd.f32 %v632, %v633
        %711 = vadd.xlane.f32.xlu0 %v710
        %v712 = vpop.xlane.xlu0 %711
        %v713 = vadd.f32 %v634, %v635
        %714 = vadd.xlane.f32.xlu0 %v713
        %v715 = vpop.xlane.xlu0 %714
        %v716 = vadd.f32 %v636, %v637
        %717 = vadd.xlane.f32.xlu0 %v716
        %v718 = vpop.xlane.xlu0 %717
        %v719 = vadd.f32 %v638, %v639
        %720 = vadd.xlane.f32.xlu0 %v719
        %v721 = vpop.xlane.xlu0 %720
        %v722 = vadd.f32 %v640, %v641
        %723 = vadd.xlane.f32.xlu0 %v722
        %v724 = vpop.xlane.xlu0 %723
        %v725 = vadd.f32 %v642, %v643
        %726 = vadd.xlane.f32.xlu0 %v725
        %v727 = vpop.xlane.xlu0 %726
        %v728 = vadd.f32 %v644, %v645
        %729 = vadd.xlane.f32.xlu0 %v728
        %v730 = vpop.xlane.xlu0 %729
        %v731 = vadd.f32 %v646, %v647
        %732 = vadd.xlane.f32.xlu0 %v731
        %v733 = vpop.xlane.xlu0 %732
        %v734 = vadd.f32 %v648, %v649
        %735 = vadd.xlane.f32.xlu0 %v734
        %v736 = vpop.xlane.xlu0 %735
        %v737 = vadd.f32 %v650, %v651
        %738 = vadd.xlane.f32.xlu0 %v737
        %v739 = vpop.xlane.xlu0 %738
        %v740 = vadd.f32 %v652, %v653
        %741 = vadd.xlane.f32.xlu0 %v740
        %v742 = vpop.xlane.xlu0 %741
        %v743 = vadd.f32 %v654, %v655
        %744 = vadd.xlane.f32.xlu0 %v743
        %v745 = vpop.xlane.xlu0 %744
        %v746 = vadd.f32 %v656, %v657
        %747 = vadd.xlane.f32.xlu0 %v746
        %v748 = vpop.xlane.xlu0 %747
        %v749 = vadd.f32 %v658, %v659
        %750 = vadd.xlane.f32.xlu0 %v749
        %v751 = vpop.xlane.xlu0 %750
        %v752 = vadd.f32 %v660, %v661
        %753 = vadd.xlane.f32.xlu0 %v752
        %v754 = vpop.xlane.xlu0 %753
        %v755 = vadd.f32 %v662, %v663
        %756 = vadd.xlane.f32.xlu0 %v755
        %v757 = vpop.xlane.xlu0 %756
        %v758 = vadd.f32 %v664, %v665
        %759 = vadd.xlane.f32.xlu0 %v758
        %v760 = vpop.xlane.xlu0 %759
        %v761 = vadd.f32 %v666, %v667
        %762 = vadd.xlane.f32.xlu0 %v761
        %v763 = vpop.xlane.xlu0 %762
        %vm764 = vcmp.ne.f32.partialorder %v670, 0.0
        %vm765 = vcmp.ne.f32.partialorder %v673, 0.0
        %vm766 = vcmp.ne.f32.partialorder %v676, 0.0
        %vm767 = vcmp.ne.f32.partialorder %v679, 0.0
        %vm768 = vcmp.ne.f32.partialorder %v682, 0.0
        %vm769 = vcmp.ne.f32.partialorder %v685, 0.0
        %vm770 = vcmp.ne.f32.partialorder %v688, 0.0
        %vm771 = vcmp.ne.f32.partialorder %v691, 0.0
        %vm772 = vcmp.ne.f32.partialorder %v694, 0.0
        %vm773 = vcmp.ne.f32.partialorder %v697, 0.0
        %vm774 = vcmp.ne.f32.partialorder %v700, 0.0
        %vm775 = vcmp.ne.f32.partialorder %v703, 0.0
        %vm776 = vcmp.ne.f32.partialorder %v706, 0.0
        %vm777 = vcmp.ne.f32.partialorder %v709, 0.0
        %vm778 = vcmp.ne.f32.partialorder %v712, 0.0
        %vm779 = vcmp.ne.f32.partialorder %v715, 0.0
        %vm780 = vcmp.ne.f32.partialorder %v718, 0.0
        %vm781 = vcmp.ne.f32.partialorder %v721, 0.0
        %vm782 = vcmp.ne.f32.partialorder %v724, 0.0
        %vm783 = vcmp.ne.f32.partialorder %v727, 0.0
        %vm784 = vcmp.ne.f32.partialorder %v730, 0.0
        %vm785 = vcmp.ne.f32.partialorder %v733, 0.0
        %vm786 = vcmp.ne.f32.partialorder %v736, 0.0
        %vm787 = vcmp.ne.f32.partialorder %v739, 0.0
        %vm788 = vcmp.ne.f32.partialorder %v742, 0.0
        %vm789 = vcmp.ne.f32.partialorder %v745, 0.0
        %vm790 = vcmp.ne.f32.partialorder %v748, 0.0
        %vm791 = vcmp.ne.f32.partialorder %v751, 0.0
        %vm792 = vcmp.ne.f32.partialorder %v754, 0.0
        %vm793 = vcmp.ne.f32.partialorder %v757, 0.0
        %vm794 = vcmp.ne.f32.partialorder %v760, 0.0
        %vm795 = vcmp.ne.f32.partialorder %v763, 0.0
        %v796 = vsel %vm764, 1, 0
        %v797 = vsel %vm765, 1, 0
        %v798 = vsel %vm766, 1, 0
        %v799 = vsel %vm767, 1, 0
        %v800 = vsel %vm768, 1, 0
        %v801 = vsel %vm769, 1, 0
        %v802 = vsel %vm770, 1, 0
        %v803 = vsel %vm771, 1, 0
        %v804 = vsel %vm772, 1, 0
        %v805 = vsel %vm773, 1, 0
        %v806 = vsel %vm774, 1, 0
        %v807 = vsel %vm775, 1, 0
        %v808 = vsel %vm776, 1, 0
        %v809 = vsel %vm777, 1, 0
        %v810 = vsel %vm778, 1, 0
        %v811 = vsel %vm779, 1, 0
        %v812 = vsel %vm780, 1, 0
        %v813 = vsel %vm781, 1, 0
        %v814 = vsel %vm782, 1, 0
        %v815 = vsel %vm783, 1, 0
        %v816 = vsel %vm784, 1, 0
        %v817 = vsel %vm785, 1, 0
        %v818 = vsel %vm786, 1, 0
        %v819 = vsel %vm787, 1, 0
        %v820 = vsel %vm788, 1, 0
        %v821 = vsel %vm789, 1, 0
        %v822 = vsel %vm790, 1, 0
        %v823 = vsel %vm791, 1, 0
        %v824 = vsel %vm792, 1, 0
        %v825 = vsel %vm793, 1, 0
        %v826 = vsel %vm794, 1, 0
        %v827 = vsel %vm795, 1, 0
        %v828 = vcvt.s32.f32 %v796
        %v829 = vcvt.s32.f32 %v797
        %v830 = vcvt.s32.f32 %v798
        %v831 = vcvt.s32.f32 %v799
        %v832 = vcvt.s32.f32 %v800
        %v833 = vcvt.s32.f32 %v801
        %v834 = vcvt.s32.f32 %v802
        %v835 = vcvt.s32.f32 %v803
        %v836 = vcvt.s32.f32 %v804
        %v837 = vcvt.s32.f32 %v805
        %v838 = vcvt.s32.f32 %v806
        %v839 = vcvt.s32.f32 %v807
        %v840 = vcvt.s32.f32 %v808
        %v841 = vcvt.s32.f32 %v809
        %v842 = vcvt.s32.f32 %v810
        %v843 = vcvt.s32.f32 %v811
        %v844 = vcvt.s32.f32 %v812
        %v845 = vcvt.s32.f32 %v813
        %v846 = vcvt.s32.f32 %v814
        %v847 = vcvt.s32.f32 %v815
        %v848 = vcvt.s32.f32 %v816
        %v849 = vcvt.s32.f32 %v817
        %v850 = vcvt.s32.f32 %v818
        %v851 = vcvt.s32.f32 %v819
        %v852 = vcvt.s32.f32 %v820
        %v853 = vcvt.s32.f32 %v821
        %v854 = vcvt.s32.f32 %v822
        %v855 = vcvt.s32.f32 %v823
        %v856 = vcvt.s32.f32 %v824
        %v857 = vcvt.s32.f32 %v825
        %v858 = vcvt.s32.f32 %v826
        %v859 = vcvt.s32.f32 %v827
        %v892 = vlaneseq
        %v893 = vand.u32 %v892, 127
        %v894 = vperm.slane %v828, %v893
        %v895 = vperm.slane %v829, %v893
        %v896 = vperm.slane %v830, %v893
        %v897 = vperm.slane %v831, %v893
        %v898 = vperm.slane %v832, %v893
        %v899 = vperm.slane %v833, %v893
        %v900 = vperm.slane %v834, %v893
        %v901 = vperm.slane %v835, %v893
        %v902 = vperm.slane %v836, %v893
        %v903 = vperm.slane %v837, %v893
        %v904 = vperm.slane %v838, %v893
        %v905 = vperm.slane %v839, %v893
        %v906 = vperm.slane %v840, %v893
        %v907 = vperm.slane %v841, %v893
        %v908 = vperm.slane %v842, %v893
        %v909 = vperm.slane %v843, %v893
        %v910 = vperm.slane %v844, %v893
        %v911 = vperm.slane %v845, %v893
        %v912 = vperm.slane %v846, %v893
        %v913 = vperm.slane %v847, %v893
        %v914 = vperm.slane %v848, %v893
        %v915 = vperm.slane %v849, %v893
        %v916 = vperm.slane %v850, %v893
        %v917 = vperm.slane %v851, %v893
        %v918 = vperm.slane %v852, %v893
        %v919 = vperm.slane %v853, %v893
        %v920 = vperm.slane %v854, %v893
        %v921 = vperm.slane %v855, %v893
        %v922 = vperm.slane %v856, %v893
        %v923 = vperm.slane %v857, %v893
        %v924 = vperm.slane %v858, %v893
        %v925 = vperm.slane %v859, %v893
        %vm926 = vcmask 1041409
        %v927 = vsel %vm926, %v895, %v894
        %vm928 = vcmask 1042434
        %v929 = vsel %vm928, %v896, %v927
        %vm930 = vcmask 1043459
        %v931 = vsel %vm930, %v897, %v929
        %vm932 = vcmask 1044484
        %v933 = vsel %vm932, %v898, %v931
        %vm934 = vcmask 1045509
        %v935 = vsel %vm934, %v899, %v933
        %vm936 = vcmask 1046534
        %v937 = vsel %vm936, %v900, %v935
        %vm938 = vcmask 1047559
        %v939 = vsel %vm938, %v901, %v937
        %v940 = vsel %vm926, %v903, %v902
        %v941 = vsel %vm928, %v904, %v940
        %v942 = vsel %vm930, %v905, %v941
        %v943 = vsel %vm932, %v906, %v942
        %v944 = vsel %vm934, %v907, %v943
        %v945 = vsel %vm936, %v908, %v944
        %v946 = vsel %vm938, %v909, %v945
        %v947 = vsel %vm926, %v911, %v910
        %v948 = vsel %vm928, %v912, %v947
        %v949 = vsel %vm930, %v913, %v948
        %v950 = vsel %vm932, %v914, %v949
        %v951 = vsel %vm934, %v915, %v950
        %v952 = vsel %vm936, %v916, %v951
        %v953 = vsel %vm938, %v917, %v952
        %v954 = vsel %vm926, %v919, %v918
        %v955 = vsel %vm928, %v920, %v954
        %v956 = vsel %vm930, %v921, %v955
        %v957 = vsel %vm932, %v922, %v956
        %v958 = vsel %vm934, %v923, %v957
        %v959 = vsel %vm936, %v924, %v958
        %v960 = vsel %vm938, %v925, %v959
        %vm965 = vcmask 64512
        %966 = vst.msk [vmem:[%s597] sm:$0xff] %vm965, %v939
        %967 = vst.msk [vmem:[%s597 + $0x8] sm:$0xff] %vm965, %v946
        %968 = vst.msk [vmem:[%s597 + $0x10] sm:$0xff] %vm965, %v953
        %969 = vst.msk [vmem:[%s597 + $0x18] sm:$0xff] %vm965, %v960
        %v970 = vpack.c.bf16 %v606, %v604
        %v971 = vpack.c.bf16 %v607, %v605
        %v972 = vpack.c.bf16 %v610, %v608
        %v973 = vpack.c.bf16 %v611, %v609
        %v974 = vpack.c.bf16 %v614, %v612
        %v975 = vpack.c.bf16 %v615, %v613
        %v976 = vpack.c.bf16 %v618, %v616
        %v977 = vpack.c.bf16 %v619, %v617
        %v978 = vpack.c.bf16 %v622, %v620
        %v979 = vpack.c.bf16 %v623, %v621
        %v980 = vpack.c.bf16 %v626, %v624
        %v981 = vpack.c.bf16 %v627, %v625
        %v982 = vpack.c.bf16 %v630, %v628
        %v983 = vpack.c.bf16 %v631, %v629
        %v984 = vpack.c.bf16 %v634, %v632
        %v985 = vpack.c.bf16 %v635, %v633
        %v986 = vpack.c.bf16 %v638, %v636
        %v987 = vpack.c.bf16 %v639, %v637
        %v988 = vpack.c.bf16 %v642, %v640
        %v989 = vpack.c.bf16 %v643, %v641
        %v990 = vpack.c.bf16 %v646, %v644
        %v991 = vpack.c.bf16 %v647, %v645
        %v992 = vpack.c.bf16 %v650, %v648
        %v993 = vpack.c.bf16 %v651, %v649
        %v994 = vpack.c.bf16 %v654, %v652
        %v995 = vpack.c.bf16 %v655, %v653
        %v996 = vpack.c.bf16 %v658, %v656
        %v997 = vpack.c.bf16 %v659, %v657
        %v998 = vpack.c.bf16 %v662, %v660
        %v999 = vpack.c.bf16 %v663, %v661
        %v1000 = vpack.c.bf16 %v666, %v664
        %v1001 = vpack.c.bf16 %v667, %v665
        %v1002 = vld [vmem:[#allocation7] sm:$0xf]
        %v1003 = vld [vmem:[#allocation7 + $0x4] sm:$0xf]
        %v1004 = vld [vmem:[#allocation7 + $0x8] sm:$0xf]
        %v1005 = vld [vmem:[#allocation7 + $0xc] sm:$0xf]
        %v1006 = vld [vmem:[#allocation7 + $0x10] sm:$0xf]
        %v1007 = vld [vmem:[#allocation7 + $0x14] sm:$0xf]
        %v1008 = vld [vmem:[#allocation7 + $0x18] sm:$0xf]
        %v1009 = vld [vmem:[#allocation7 + $0x1c] sm:$0xf]
        %v1010 = vld [vmem:[#allocation7 + $0x20] sm:$0xf]
        %v1011 = vld [vmem:[#allocation7 + $0x24] sm:$0xf]
        %v1012 = vld [vmem:[#allocation7 + $0x28] sm:$0xf]
        %v1013 = vld [vmem:[#allocation7 + $0x2c] sm:$0xf]
        %v1014 = vld [vmem:[#allocation7 + $0x30] sm:$0xf]
        %v1015 = vld [vmem:[#allocation7 + $0x34] sm:$0xf]
        %v1016 = vld [vmem:[#allocation7 + $0x38] sm:$0xf]
        %v1017 = vld [vmem:[#allocation7 + $0x3c] sm:$0xf]
        %v1018 = vld [vmem:[#allocation7 + $0x40] sm:$0xf]
        %v1019 = vld [vmem:[#allocation7 + $0x44] sm:$0xf]
        %v1020 = vld [vmem:[#allocation7 + $0x48] sm:$0xf]
        %v1021 = vld [vmem:[#allocation7 + $0x4c] sm:$0xf]
        %v1022 = vld [vmem:[#allocation7 + $0x50] sm:$0xf]
        %v1023 = vld [vmem:[#allocation7 + $0x54] sm:$0xf]
        %v1024 = vld [vmem:[#allocation7 + $0x58] sm:$0xf]
        %v1025 = vld [vmem:[#allocation7 + $0x5c] sm:$0xf]
        %v1026 = vld [vmem:[#allocation7 + $0x60] sm:$0xf]
        %v1027 = vld [vmem:[#allocation7 + $0x64] sm:$0xf]
        %v1028 = vld [vmem:[#allocation7 + $0x68] sm:$0xf]
        %v1029 = vld [vmem:[#allocation7 + $0x6c] sm:$0xf]
        %v1030 = vld [vmem:[#allocation7 + $0x70] sm:$0xf]
        %v1031 = vld [vmem:[#allocation7 + $0x74] sm:$0xf]
        %v1032 = vld [vmem:[#allocation7 + $0x78] sm:$0xf]
        %v1033 = vld [vmem:[#allocation7 + $0x7c] sm:$0xf]
        %v1034 = vld [vmem:[%s3] sm:$0x1]
        %v1036 = vperm.slane %v1034, 0
        %v1070 = vunpack.c.l.b16 %v1002
        %v1071 = vunpack.c.l.b16 %v1003
        %v1072 = vunpack.c.l.b16 %v1004
        %v1073 = vunpack.c.l.b16 %v1005
        %v1074 = vunpack.c.l.b16 %v1006
        %v1075 = vunpack.c.l.b16 %v1007
        %v1076 = vunpack.c.l.b16 %v1008
        %v1077 = vunpack.c.l.b16 %v1009
        %v1078 = vunpack.c.l.b16 %v1010
        %v1079 = vunpack.c.l.b16 %v1011
        %v1080 = vunpack.c.l.b16 %v1012
        %v1081 = vunpack.c.l.b16 %v1013
        %v1082 = vunpack.c.l.b16 %v1014
        %v1083 = vunpack.c.l.b16 %v1015
        %v1084 = vunpack.c.l.b16 %v1016
        %v1085 = vunpack.c.l.b16 %v1017
        %v1086 = vunpack.c.l.b16 %v1018
        %v1087 = vunpack.c.l.b16 %v1019
        %v1088 = vunpack.c.l.b16 %v1020
        %v1089 = vunpack.c.l.b16 %v1021
        %v1090 = vunpack.c.l.b16 %v1022
        %v1091 = vunpack.c.l.b16 %v1023
        %v1092 = vunpack.c.l.b16 %v1024
        %v1093 = vunpack.c.l.b16 %v1025
        %v1094 = vunpack.c.l.b16 %v1026
        %v1095 = vunpack.c.l.b16 %v1027
        %v1096 = vunpack.c.l.b16 %v1028
        %v1097 = vunpack.c.l.b16 %v1029
        %v1098 = vunpack.c.l.b16 %v1030
        %v1099 = vunpack.c.l.b16 %v1031
        %v1100 = vunpack.c.l.b16 %v1032
        %v1101 = vunpack.c.l.b16 %v1033
        %v1102 = vpack.c.b16 %v1071, %v1070
        %v1103 = vpack.c.b16 %v1073, %v1072
        %v1104 = vpack.c.b16 %v1075, %v1074
        %v1105 = vpack.c.b16 %v1077, %v1076
        %v1106 = vpack.c.b16 %v1079, %v1078
        %v1107 = vpack.c.b16 %v1081, %v1080
        %v1108 = vpack.c.b16 %v1083, %v1082
        %v1109 = vpack.c.b16 %v1085, %v1084
        %v1110 = vpack.c.b16 %v1087, %v1086
        %v1111 = vpack.c.b16 %v1089, %v1088
        %v1112 = vpack.c.b16 %v1091, %v1090
        %v1113 = vpack.c.b16 %v1093, %v1092
        %v1114 = vpack.c.b16 %v1095, %v1094
        %v1115 = vpack.c.b16 %v1097, %v1096
        %v1116 = vpack.c.b16 %v1099, %v1098
        %v1117 = vpack.c.b16 %v1101, %v1100
        %1134 = vmatpush.bf16.msra.mxu0 %v1109
        %1135 = vmatpush.bf16.msra.mxu0 %v1108
        %1136 = vmatpush.bf16.msra.mxu0 %v1107
        %1137 = vmatpush.bf16.msra.mxu0 %v1106
        %1138 = vmatpush.bf16.msra.mxu0 %v1105
        %1139 = vmatpush.bf16.msra.mxu0 %v1104
        %1140 = vmatpush.bf16.msra.mxu0 %v1103
        %1141 = vmatpush.bf16.msra.mxu0 %v1102
        %1142 = vmatmul.bf16.gmra.mxu0 %v970
        %v1143 = vpop.f32.mrf.mxu0
        %v1144 = vadd.f32 %v1036, %v1143
        %v1145 = vpop.f32.mrf.mxu0
        %v1146 = vadd.f32 %v1036, %v1145
        %1147 = vmatmul.bf16.gmra.mxu0 %v972
        %v1148 = vpop.f32.mrf.mxu0
        %v1149 = vadd.f32 %v1036, %v1148
        %v1150 = vpop.f32.mrf.mxu0
        %v1151 = vadd.f32 %v1036, %v1150
        %1152 = vmatmul.bf16.gmra.mxu0 %v974
        %v1153 = vpop.f32.mrf.mxu0
        %v1154 = vadd.f32 %v1036, %v1153
        %v1155 = vpop.f32.mrf.mxu0
        %v1156 = vadd.f32 %v1036, %v1155
        %1157 = vmatmul.bf16.gmra.mxu0 %v976
        %v1158 = vpop.f32.mrf.mxu0
        %v1159 = vadd.f32 %v1036, %v1158
        %v1160 = vpop.f32.mrf.mxu0
        %v1161 = vadd.f32 %v1036, %v1160
        %1162 = vmatmul.bf16.gmra.mxu0 %v978
        %v1163 = vpop.f32.mrf.mxu0
        %v1164 = vadd.f32 %v1036, %v1163
        %v1165 = vpop.f32.mrf.mxu0
        %v1166 = vadd.f32 %v1036, %v1165
        %1167 = vmatmul.bf16.gmra.mxu0 %v980
        %v1168 = vpop.f32.mrf.mxu0
        %v1169 = vadd.f32 %v1036, %v1168
        %v1170 = vpop.f32.mrf.mxu0
        %v1171 = vadd.f32 %v1036, %v1170
        %1172 = vmatmul.bf16.gmra.mxu0 %v982
        %v1173 = vpop.f32.mrf.mxu0
        %v1174 = vadd.f32 %v1036, %v1173
        %v1175 = vpop.f32.mrf.mxu0
        %v1176 = vadd.f32 %v1036, %v1175
        %1177 = vmatmul.bf16.gmra.mxu0 %v984
        %v1178 = vpop.f32.mrf.mxu0
        %v1179 = vadd.f32 %v1036, %v1178
        %v1180 = vpop.f32.mrf.mxu0
        %v1181 = vadd.f32 %v1036, %v1180
        %1182 = vmatmul.bf16.gmra.mxu0 %v986
        %v1183 = vpop.f32.mrf.mxu0
        %v1184 = vadd.f32 %v1036, %v1183
        %v1185 = vpop.f32.mrf.mxu0
        %v1186 = vadd.f32 %v1036, %v1185
        %1187 = vmatmul.bf16.gmra.mxu0 %v988
        %v1188 = vpop.f32.mrf.mxu0
        %v1189 = vadd.f32 %v1036, %v1188
        %v1190 = vpop.f32.mrf.mxu0
        %v1191 = vadd.f32 %v1036, %v1190
        %1192 = vmatmul.bf16.gmra.mxu0 %v990
        %v1193 = vpop.f32.mrf.mxu0
        %v1194 = vadd.f32 %v1036, %v1193
        %v1195 = vpop.f32.mrf.mxu0
        %v1196 = vadd.f32 %v1036, %v1195
        %1197 = vmatmul.bf16.gmra.mxu0 %v992
        %v1198 = vpop.f32.mrf.mxu0
        %v1199 = vadd.f32 %v1036, %v1198
        %v1200 = vpop.f32.mrf.mxu0
        %v1201 = vadd.f32 %v1036, %v1200
        %1202 = vmatmul.bf16.gmra.mxu0 %v994
        %v1203 = vpop.f32.mrf.mxu0
        %v1204 = vadd.f32 %v1036, %v1203
        %v1205 = vpop.f32.mrf.mxu0
        %v1206 = vadd.f32 %v1036, %v1205
        %1207 = vmatmul.bf16.gmra.mxu0 %v996
        %v1208 = vpop.f32.mrf.mxu0
        %v1209 = vadd.f32 %v1036, %v1208
        %v1210 = vpop.f32.mrf.mxu0
        %v1211 = vadd.f32 %v1036, %v1210
        %1212 = vmatmul.bf16.gmra.mxu0 %v998
        %v1213 = vpop.f32.mrf.mxu0
        %v1214 = vadd.f32 %v1036, %v1213
        %v1215 = vpop.f32.mrf.mxu0
        %v1216 = vadd.f32 %v1036, %v1215
        %1217 = vmatmul.bf16.gmra.mxu0 %v1000
        %v1218 = vpop.f32.mrf.mxu0
        %v1219 = vadd.f32 %v1036, %v1218
        %v1220 = vpop.f32.mrf.mxu0
        %v1221 = vadd.f32 %v1036, %v1220
        %1222 = vdwg.mxu0
        %1223 = vmatpush.bf16.msra.mxu0 %v1117
        %1224 = vmatpush.bf16.msra.mxu0 %v1116
        %1225 = vmatpush.bf16.msra.mxu0 %v1115
        %1226 = vmatpush.bf16.msra.mxu0 %v1114
        %1227 = vmatpush.bf16.msra.mxu0 %v1113
        %1228 = vmatpush.bf16.msra.mxu0 %v1112
        %1229 = vmatpush.bf16.msra.mxu0 %v1111
        %1230 = vmatpush.bf16.msra.mxu0 %v1110
        %1231 = vmatmul.bf16.gmra.mxu0 %v971
        %v1232 = vpop.f32.mrf.mxu0
        %v1233 = vadd.f32 %v1144, %v1232
        %v1234 = vpop.f32.mrf.mxu0
        %v1235 = vadd.f32 %v1146, %v1234
        %1236 = vmatmul.bf16.gmra.mxu0 %v973
        %v1237 = vpop.f32.mrf.mxu0
        %v1238 = vadd.f32 %v1149, %v1237
        %v1239 = vpop.f32.mrf.mxu0
        %v1240 = vadd.f32 %v1151, %v1239
        %1241 = vmatmul.bf16.gmra.mxu0 %v975
        %v1242 = vpop.f32.mrf.mxu0
        %v1243 = vadd.f32 %v1154, %v1242
        %v1244 = vpop.f32.mrf.mxu0
        %v1245 = vadd.f32 %v1156, %v1244
        %1246 = vmatmul.bf16.gmra.mxu0 %v977
        %v1247 = vpop.f32.mrf.mxu0
        %v1248 = vadd.f32 %v1159, %v1247
        %v1249 = vpop.f32.mrf.mxu0
        %v1250 = vadd.f32 %v1161, %v1249
        %1251 = vmatmul.bf16.gmra.mxu0 %v979
        %v1252 = vpop.f32.mrf.mxu0
        %v1253 = vadd.f32 %v1164, %v1252
        %v1254 = vpop.f32.mrf.mxu0
        %v1255 = vadd.f32 %v1166, %v1254
        %1256 = vmatmul.bf16.gmra.mxu0 %v981
        %v1257 = vpop.f32.mrf.mxu0
        %v1258 = vadd.f32 %v1169, %v1257
        %v1259 = vpop.f32.mrf.mxu0
        %v1260 = vadd.f32 %v1171, %v1259
        %1261 = vmatmul.bf16.gmra.mxu0 %v983
        %v1262 = vpop.f32.mrf.mxu0
        %v1263 = vadd.f32 %v1174, %v1262
        %v1264 = vpop.f32.mrf.mxu0
        %v1265 = vadd.f32 %v1176, %v1264
        %1266 = vmatmul.bf16.gmra.mxu0 %v985
        %v1267 = vpop.f32.mrf.mxu0
        %v1268 = vadd.f32 %v1179, %v1267
        %v1269 = vpop.f32.mrf.mxu0
        %v1270 = vadd.f32 %v1181, %v1269
        %1271 = vmatmul.bf16.gmra.mxu0 %v987
        %v1272 = vpop.f32.mrf.mxu0
        %v1273 = vadd.f32 %v1184, %v1272
        %v1274 = vpop.f32.mrf.mxu0
        %v1275 = vadd.f32 %v1186, %v1274
        %1276 = vmatmul.bf16.gmra.mxu0 %v989
        %v1277 = vpop.f32.mrf.mxu0
        %v1278 = vadd.f32 %v1189, %v1277
        %v1279 = vpop.f32.mrf.mxu0
        %v1280 = vadd.f32 %v1191, %v1279
        %1281 = vmatmul.bf16.gmra.mxu0 %v991
        %v1282 = vpop.f32.mrf.mxu0
        %v1283 = vadd.f32 %v1194, %v1282
        %v1284 = vpop.f32.mrf.mxu0
        %v1285 = vadd.f32 %v1196, %v1284
        %1286 = vmatmul.bf16.gmra.mxu0 %v993
        %v1287 = vpop.f32.mrf.mxu0
        %v1288 = vadd.f32 %v1199, %v1287
        %v1289 = vpop.f32.mrf.mxu0
        %v1290 = vadd.f32 %v1201, %v1289
        %1291 = vmatmul.bf16.gmra.mxu0 %v995
        %v1292 = vpop.f32.mrf.mxu0
        %v1293 = vadd.f32 %v1204, %v1292
        %v1294 = vpop.f32.mrf.mxu0
        %v1295 = vadd.f32 %v1206, %v1294
        %1296 = vmatmul.bf16.gmra.mxu0 %v997
        %v1297 = vpop.f32.mrf.mxu0
        %v1298 = vadd.f32 %v1209, %v1297
        %v1299 = vpop.f32.mrf.mxu0
        %v1300 = vadd.f32 %v1211, %v1299
        %1301 = vmatmul.bf16.gmra.mxu0 %v999
        %v1302 = vpop.f32.mrf.mxu0
        %v1303 = vadd.f32 %v1214, %v1302
        %v1304 = vpop.f32.mrf.mxu0
        %v1305 = vadd.f32 %v1216, %v1304
        %1306 = vmatmul.bf16.gmra.mxu0 %v1001
        %v1307 = vpop.f32.mrf.mxu0
        %v1308 = vadd.f32 %v1219, %v1307
        %v1309 = vpop.f32.mrf.mxu0
        %v1310 = vadd.f32 %v1221, %v1309
        %1311 = vdwg.mxu0
        %v1312 = vmax.f32 %v1233, 0.0
        %v1313 = vmax.f32 %v1235, 0.0
        %v1314 = vmax.f32 %v1238, 0.0
        %v1315 = vmax.f32 %v1240, 0.0
        %v1316 = vmax.f32 %v1243, 0.0
        %v1317 = vmax.f32 %v1245, 0.0
        %v1318 = vmax.f32 %v1248, 0.0
        %v1319 = vmax.f32 %v1250, 0.0
        %v1320 = vmax.f32 %v1253, 0.0
        %v1321 = vmax.f32 %v1255, 0.0
        %v1322 = vmax.f32 %v1258, 0.0
        %v1323 = vmax.f32 %v1260, 0.0
        %v1324 = vmax.f32 %v1263, 0.0
        %v1325 = vmax.f32 %v1265, 0.0
        %v1326 = vmax.f32 %v1268, 0.0
        %v1327 = vmax.f32 %v1270, 0.0
        %v1328 = vmax.f32 %v1273, 0.0
        %v1329 = vmax.f32 %v1275, 0.0
        %v1330 = vmax.f32 %v1278, 0.0
        %v1331 = vmax.f32 %v1280, 0.0
        %v1332 = vmax.f32 %v1283, 0.0
        %v1333 = vmax.f32 %v1285, 0.0
        %v1334 = vmax.f32 %v1288, 0.0
        %v1335 = vmax.f32 %v1290, 0.0
        %v1336 = vmax.f32 %v1293, 0.0
        %v1337 = vmax.f32 %v1295, 0.0
        %v1338 = vmax.f32 %v1298, 0.0
        %v1339 = vmax.f32 %v1300, 0.0
        %v1340 = vmax.f32 %v1303, 0.0
        %v1341 = vmax.f32 %v1305, 0.0
        %v1342 = vmax.f32 %v1308, 0.0
        %v1343 = vmax.f32 %v1310, 0.0
        %v1344 = vmul.f32 %v1312, %v828
        %v1345 = vmul.f32 %v1313, %v829
        %v1346 = vmul.f32 %v1314, %v830
        %v1347 = vmul.f32 %v1315, %v831
        %v1348 = vmul.f32 %v1316, %v832
        %v1349 = vmul.f32 %v1317, %v833
        %v1350 = vmul.f32 %v1318, %v834
        %v1351 = vmul.f32 %v1319, %v835
        %v1352 = vmul.f32 %v1320, %v836
        %v1353 = vmul.f32 %v1321, %v837
        %v1354 = vmul.f32 %v1322, %v838
        %v1355 = vmul.f32 %v1323, %v839
        %v1356 = vmul.f32 %v1324, %v840
        %v1357 = vmul.f32 %v1325, %v841
        %v1358 = vmul.f32 %v1326, %v842
        %v1359 = vmul.f32 %v1327, %v843
        %v1360 = vmul.f32 %v1328, %v844
        %v1361 = vmul.f32 %v1329, %v845
        %v1362 = vmul.f32 %v1330, %v846
        %v1363 = vmul.f32 %v1331, %v847
        %v1364 = vmul.f32 %v1332, %v848
        %v1365 = vmul.f32 %v1333, %v849
        %v1366 = vmul.f32 %v1334, %v850
        %v1367 = vmul.f32 %v1335, %v851
        %v1368 = vmul.f32 %v1336, %v852
        %v1369 = vmul.f32 %v1337, %v853
        %v1370 = vmul.f32 %v1338, %v854
        %v1371 = vmul.f32 %v1339, %v855
        %v1372 = vmul.f32 %v1340, %v856
        %v1373 = vmul.f32 %v1341, %v857
        %v1374 = vmul.f32 %v1342, %v858
        %v1375 = vmul.f32 %v1343, %v859
        %1376 = vst [vmem:[%s576] sm:$0xff] %v1344
        %1377 = vst [vmem:[%s576 + $0x8] sm:$0xff] %v1345
        %1378 = vst [vmem:[%s576 + $0x10] sm:$0xff] %v1346
        %1379 = vst [vmem:[%s576 + $0x18] sm:$0xff] %v1347
        %1380 = vst [vmem:[%s576 + $0x20] sm:$0xff] %v1348
        %1381 = vst [vmem:[%s576 + $0x28] sm:$0xff] %v1349
        %1382 = vst [vmem:[%s576 + $0x30] sm:$0xff] %v1350
        %1383 = vst [vmem:[%s576 + $0x38] sm:$0xff] %v1351
        %1384 = vst [vmem:[%s576 + $0x40] sm:$0xff] %v1352
        %1385 = vst [vmem:[%s576 + $0x48] sm:$0xff] %v1353
        %1386 = vst [vmem:[%s576 + $0x50] sm:$0xff] %v1354
        %1387 = vst [vmem:[%s576 + $0x58] sm:$0xff] %v1355
        %1388 = vst [vmem:[%s576 + $0x60] sm:$0xff] %v1356
        %1389 = vst [vmem:[%s576 + $0x68] sm:$0xff] %v1357
        %1390 = vst [vmem:[%s576 + $0x70] sm:$0xff] %v1358
        %1391 = vst [vmem:[%s576 + $0x78] sm:$0xff] %v1359
        %1392 = vst [vmem:[%s576 + $0x80] sm:$0xff] %v1360
        %1393 = vst [vmem:[%s576 + $0x88] sm:$0xff] %v1361
        %1394 = vst [vmem:[%s576 + $0x90] sm:$0xff] %v1362
        %1395 = vst [vmem:[%s576 + $0x98] sm:$0xff] %v1363
        %1396 = vst [vmem:[%s576 + $0xa0] sm:$0xff] %v1364
        %1397 = vst [vmem:[%s576 + $0xa8] sm:$0xff] %v1365
        %1398 = vst [vmem:[%s576 + $0xb0] sm:$0xff] %v1366
        %1399 = vst [vmem:[%s576 + $0xb8] sm:$0xff] %v1367
        %1400 = vst [vmem:[%s576 + $0xc0] sm:$0xff] %v1368
        %1401 = vst [vmem:[%s576 + $0xc8] sm:$0xff] %v1369
        %1402 = vst [vmem:[%s576 + $0xd0] sm:$0xff] %v1370
        %1403 = vst [vmem:[%s576 + $0xd8] sm:$0xff] %v1371
        %1404 = vst [vmem:[%s576 + $0xe0] sm:$0xff] %v1372
        %1405 = vst [vmem:[%s576 + $0xe8] sm:$0xff] %v1373
        %1406 = vst [vmem:[%s576 + $0xf0] sm:$0xff] %v1374
        %1407 = vst [vmem:[%s576 + $0xf8] sm:$0xff] %v1375
        %v1408 = vpack.c.bf16 %v1345, %v1344
        %v1409 = vpack.c.bf16 %v1347, %v1346
        %v1410 = vpack.c.bf16 %v1349, %v1348
        %v1411 = vpack.c.bf16 %v1351, %v1350
        %v1412 = vpack.c.bf16 %v1353, %v1352
        %v1413 = vpack.c.bf16 %v1355, %v1354
        %v1414 = vpack.c.bf16 %v1357, %v1356
        %v1415 = vpack.c.bf16 %v1359, %v1358
        %v1416 = vpack.c.bf16 %v1361, %v1360
        %v1417 = vpack.c.bf16 %v1363, %v1362
        %v1418 = vpack.c.bf16 %v1365, %v1364
        %v1419 = vpack.c.bf16 %v1367, %v1366
        %v1420 = vpack.c.bf16 %v1369, %v1368
        %v1421 = vpack.c.bf16 %v1371, %v1370
        %v1422 = vpack.c.bf16 %v1373, %v1372
        %v1423 = vpack.c.bf16 %v1375, %v1374
        %v1424 = vld [vmem:[#allocation8] sm:$0xf]
        %v1425 = vld [vmem:[#allocation8 + $0x4] sm:$0xf]
        %v1426 = vld [vmem:[#allocation8 + $0x8] sm:$0xf]
        %v1427 = vld [vmem:[#allocation8 + $0xc] sm:$0xf]
        %v1428 = vld [vmem:[#allocation8 + $0x10] sm:$0xf]
        %v1429 = vld [vmem:[#allocation8 + $0x14] sm:$0xf]
        %v1430 = vld [vmem:[#allocation8 + $0x18] sm:$0xf]
        %v1431 = vld [vmem:[#allocation8 + $0x1c] sm:$0xf]
        %v1432 = vld [vmem:[#allocation8 + $0x20] sm:$0xf]
        %v1433 = vld [vmem:[#allocation8 + $0x24] sm:$0xf]
        %v1434 = vld [vmem:[#allocation8 + $0x28] sm:$0xf]
        %v1435 = vld [vmem:[#allocation8 + $0x2c] sm:$0xf]
        %v1436 = vld [vmem:[#allocation8 + $0x30] sm:$0xf]
        %v1437 = vld [vmem:[#allocation8 + $0x34] sm:$0xf]
        %v1438 = vld [vmem:[#allocation8 + $0x38] sm:$0xf]
        %v1439 = vld [vmem:[#allocation8 + $0x3c] sm:$0xf]
        %v1440 = vld [vmem:[%s5] sm:$0x1]
        %v1442 = vperm.slane %v1440, 0
        %v1460 = vunpack.c.l.b16 %v1424
        %v1461 = vunpack.c.l.b16 %v1425
        %v1462 = vunpack.c.l.b16 %v1426
        %v1463 = vunpack.c.l.b16 %v1427
        %v1464 = vunpack.c.l.b16 %v1428
        %v1465 = vunpack.c.l.b16 %v1429
        %v1466 = vunpack.c.l.b16 %v1430
        %v1467 = vunpack.c.l.b16 %v1431
        %v1468 = vunpack.c.l.b16 %v1432
        %v1469 = vunpack.c.l.b16 %v1433
        %v1470 = vunpack.c.l.b16 %v1434
        %v1471 = vunpack.c.l.b16 %v1435
        %v1472 = vunpack.c.l.b16 %v1436
        %v1473 = vunpack.c.l.b16 %v1437
        %v1474 = vunpack.c.l.b16 %v1438
        %v1475 = vunpack.c.l.b16 %v1439
        %v1476 = vpack.c.b16 %v1461, %v1460
        %v1477 = vpack.c.b16 %v1463, %v1462
        %v1478 = vpack.c.b16 %v1465, %v1464
        %v1479 = vpack.c.b16 %v1467, %v1466
        %v1480 = vpack.c.b16 %v1469, %v1468
        %v1481 = vpack.c.b16 %v1471, %v1470
        %v1482 = vpack.c.b16 %v1473, %v1472
        %v1483 = vpack.c.b16 %v1475, %v1474
        %1492 = vmatpush.bf16.msra.mxu0 %v1483
        %1493 = vmatpush.bf16.msra.mxu0 %v1482
        %1494 = vmatpush.bf16.msra.mxu0 %v1481
        %1495 = vmatpush.bf16.msra.mxu0 %v1480
        %1496 = vmatpush.bf16.msra.mxu0 %v1479
        %1497 = vmatpush.bf16.msra.mxu0 %v1478
        %1498 = vmatpush.bf16.msra.mxu0 %v1477
        %1499 = vmatpush.bf16.msra.mxu0 %v1476
        %1500 = vmatmul.bf16.gmra.mxu0 %v1408
        %v1501 = vpop.f32.mrf.mxu0
        %v1502 = vadd.f32 %v1442, %v1501
        %v1503 = vpop.f32.mrf.mxu0
        %v1504 = vadd.f32 %v1442, %v1503
        %1505 = vmatmul.bf16.gmra.mxu0 %v1409
        %v1506 = vpop.f32.mrf.mxu0
        %v1507 = vadd.f32 %v1442, %v1506
        %v1508 = vpop.f32.mrf.mxu0
        %v1509 = vadd.f32 %v1442, %v1508
        %1510 = vmatmul.bf16.gmra.mxu0 %v1410
        %v1511 = vpop.f32.mrf.mxu0
        %v1512 = vadd.f32 %v1442, %v1511
        %v1513 = vpop.f32.mrf.mxu0
        %v1514 = vadd.f32 %v1442, %v1513
        %1515 = vmatmul.bf16.gmra.mxu0 %v1411
        %v1516 = vpop.f32.mrf.mxu0
        %v1517 = vadd.f32 %v1442, %v1516
        %v1518 = vpop.f32.mrf.mxu0
        %v1519 = vadd.f32 %v1442, %v1518
        %1520 = vmatmul.bf16.gmra.mxu0 %v1412
        %v1521 = vpop.f32.mrf.mxu0
        %v1522 = vadd.f32 %v1442, %v1521
        %v1523 = vpop.f32.mrf.mxu0
        %v1524 = vadd.f32 %v1442, %v1523
        %1525 = vmatmul.bf16.gmra.mxu0 %v1413
        %v1526 = vpop.f32.mrf.mxu0
        %v1527 = vadd.f32 %v1442, %v1526
        %v1528 = vpop.f32.mrf.mxu0
        %v1529 = vadd.f32 %v1442, %v1528
        %1530 = vmatmul.bf16.gmra.mxu0 %v1414
        %v1531 = vpop.f32.mrf.mxu0
        %v1532 = vadd.f32 %v1442, %v1531
        %v1533 = vpop.f32.mrf.mxu0
        %v1534 = vadd.f32 %v1442, %v1533
        %1535 = vmatmul.bf16.gmra.mxu0 %v1415
        %v1536 = vpop.f32.mrf.mxu0
        %v1537 = vadd.f32 %v1442, %v1536
        %v1538 = vpop.f32.mrf.mxu0
        %v1539 = vadd.f32 %v1442, %v1538
        %1540 = vmatmul.bf16.gmra.mxu0 %v1416
        %v1541 = vpop.f32.mrf.mxu0
        %v1542 = vadd.f32 %v1442, %v1541
        %v1543 = vpop.f32.mrf.mxu0
        %v1544 = vadd.f32 %v1442, %v1543
        %1545 = vmatmul.bf16.gmra.mxu0 %v1417
        %v1546 = vpop.f32.mrf.mxu0
        %v1547 = vadd.f32 %v1442, %v1546
        %v1548 = vpop.f32.mrf.mxu0
        %v1549 = vadd.f32 %v1442, %v1548
        %1550 = vmatmul.bf16.gmra.mxu0 %v1418
        %v1551 = vpop.f32.mrf.mxu0
        %v1552 = vadd.f32 %v1442, %v1551
        %v1553 = vpop.f32.mrf.mxu0
        %v1554 = vadd.f32 %v1442, %v1553
        %1555 = vmatmul.bf16.gmra.mxu0 %v1419
        %v1556 = vpop.f32.mrf.mxu0
        %v1557 = vadd.f32 %v1442, %v1556
        %v1558 = vpop.f32.mrf.mxu0
        %v1559 = vadd.f32 %v1442, %v1558
        %1560 = vmatmul.bf16.gmra.mxu0 %v1420
        %v1561 = vpop.f32.mrf.mxu0
        %v1562 = vadd.f32 %v1442, %v1561
        %v1563 = vpop.f32.mrf.mxu0
        %v1564 = vadd.f32 %v1442, %v1563
        %1565 = vmatmul.bf16.gmra.mxu0 %v1421
        %v1566 = vpop.f32.mrf.mxu0
        %v1567 = vadd.f32 %v1442, %v1566
        %v1568 = vpop.f32.mrf.mxu0
        %v1569 = vadd.f32 %v1442, %v1568
        %1570 = vmatmul.bf16.gmra.mxu0 %v1422
        %v1571 = vpop.f32.mrf.mxu0
        %v1572 = vadd.f32 %v1442, %v1571
        %v1573 = vpop.f32.mrf.mxu0
        %v1574 = vadd.f32 %v1442, %v1573
        %1575 = vmatmul.bf16.gmra.mxu0 %v1423
        %v1576 = vpop.f32.mrf.mxu0
        %v1577 = vadd.f32 %v1442, %v1576
        %v1578 = vpop.f32.mrf.mxu0
        %v1579 = vadd.f32 %v1442, %v1578
        %1580 = vdwg.mxu0
        %1581 = vst [vmem:[%s583] sm:$0xff] %v1502
        %1582 = vst [vmem:[%s583 + $0x8] sm:$0xff] %v1504
        %1583 = vst [vmem:[%s583 + $0x10] sm:$0xff] %v1507
        %1584 = vst [vmem:[%s583 + $0x18] sm:$0xff] %v1509
        %1585 = vst [vmem:[%s583 + $0x20] sm:$0xff] %v1512
        %1586 = vst [vmem:[%s583 + $0x28] sm:$0xff] %v1514
        %1587 = vst [vmem:[%s583 + $0x30] sm:$0xff] %v1517
        %1588 = vst [vmem:[%s583 + $0x38] sm:$0xff] %v1519
        %1589 = vst [vmem:[%s583 + $0x40] sm:$0xff] %v1522
        %1590 = vst [vmem:[%s583 + $0x48] sm:$0xff] %v1524
        %1591 = vst [vmem:[%s583 + $0x50] sm:$0xff] %v1527
        %1592 = vst [vmem:[%s583 + $0x58] sm:$0xff] %v1529
        %1593 = vst [vmem:[%s583 + $0x60] sm:$0xff] %v1532
        %1594 = vst [vmem:[%s583 + $0x68] sm:$0xff] %v1534
        %1595 = vst [vmem:[%s583 + $0x70] sm:$0xff] %v1537
        %1596 = vst [vmem:[%s583 + $0x78] sm:$0xff] %v1539
        %1597 = vst [vmem:[%s583 + $0x80] sm:$0xff] %v1542
        %1598 = vst [vmem:[%s583 + $0x88] sm:$0xff] %v1544
        %1599 = vst [vmem:[%s583 + $0x90] sm:$0xff] %v1547
        %1600 = vst [vmem:[%s583 + $0x98] sm:$0xff] %v1549
        %1601 = vst [vmem:[%s583 + $0xa0] sm:$0xff] %v1552
        %1602 = vst [vmem:[%s583 + $0xa8] sm:$0xff] %v1554
        %1603 = vst [vmem:[%s583 + $0xb0] sm:$0xff] %v1557
        %1604 = vst [vmem:[%s583 + $0xb8] sm:$0xff] %v1559
        %1605 = vst [vmem:[%s583 + $0xc0] sm:$0xff] %v1562
        %1606 = vst [vmem:[%s583 + $0xc8] sm:$0xff] %v1564
        %1607 = vst [vmem:[%s583 + $0xd0] sm:$0xff] %v1567
        %1608 = vst [vmem:[%s583 + $0xd8] sm:$0xff] %v1569
        %1609 = vst [vmem:[%s583 + $0xe0] sm:$0xff] %v1572
        %1610 = vst [vmem:[%s583 + $0xe8] sm:$0xff] %v1574
        %1611 = vst [vmem:[%s583 + $0xf0] sm:$0xff] %v1577
        %1612 = vst [vmem:[%s583 + $0xf8] sm:$0xff] %v1579
        %v1613 = vld [vmem:[%s514] sm:$0xff]
        %v1614 = vld [vmem:[%s514 + $0x8] sm:$0xff]
        %v1615 = vld [vmem:[%s514 + $0x10] sm:$0xff]
        %v1616 = vld [vmem:[%s514 + $0x18] sm:$0xff]
        %v1617 = vpack.c.bf16 %v1614, %v1613
        %v1618 = vpack.c.bf16 %v1616, %v1615
        %v1619 = vld [vmem:[#allocation10] sm:$0xf]
        %v1620 = vld [vmem:[#allocation10 + $0x4] sm:$0xf]
        %v1621 = vld [vmem:[#allocation10 + $0x8] sm:$0xf]
        %v1622 = vld [vmem:[#allocation10 + $0xc] sm:$0xf]
        %v1623 = vld [vmem:[#allocation10 + $0x10] sm:$0xf]
        %v1624 = vld [vmem:[#allocation10 + $0x14] sm:$0xf]
        %v1625 = vld [vmem:[#allocation10 + $0x18] sm:$0xf]
        %v1626 = vld [vmem:[#allocation10 + $0x1c] sm:$0xf]
        %v1627 = vld [vmem:[#allocation10 + $0x20] sm:$0xf]
        %v1628 = vld [vmem:[#allocation10 + $0x24] sm:$0xf]
        %v1629 = vld [vmem:[#allocation10 + $0x28] sm:$0xf]
        %v1630 = vld [vmem:[#allocation10 + $0x2c] sm:$0xf]
        %v1631 = vld [vmem:[#allocation10 + $0x30] sm:$0xf]
        %v1632 = vld [vmem:[#allocation10 + $0x34] sm:$0xf]
        %v1633 = vld [vmem:[#allocation10 + $0x38] sm:$0xf]
        %v1634 = vld [vmem:[#allocation10 + $0x3c] sm:$0xf]
        %v1635 = vld [vmem:[%s7] sm:$0x1]
        %v1637 = vperm.slane %v1635, 0
        %v1655 = vunpack.c.l.b16 %v1619
        %v1656 = vunpack.c.l.b16 %v1620
        %v1657 = vunpack.c.l.b16 %v1621
        %v1658 = vunpack.c.l.b16 %v1622
        %v1659 = vunpack.c.l.b16 %v1623
        %v1660 = vunpack.c.l.b16 %v1624
        %v1661 = vunpack.c.l.b16 %v1625
        %v1662 = vunpack.c.l.b16 %v1626
        %v1663 = vunpack.c.l.b16 %v1627
        %v1664 = vunpack.c.l.b16 %v1628
        %v1665 = vunpack.c.l.b16 %v1629
        %v1666 = vunpack.c.l.b16 %v1630
        %v1667 = vunpack.c.l.b16 %v1631
        %v1668 = vunpack.c.l.b16 %v1632
        %v1669 = vunpack.c.l.b16 %v1633
        %v1670 = vunpack.c.l.b16 %v1634
        %v1671 = vpack.c.b16 %v1656, %v1655
        %v1672 = vpack.c.b16 %v1658, %v1657
        %v1673 = vpack.c.b16 %v1660, %v1659
        %v1674 = vpack.c.b16 %v1662, %v1661
        %v1675 = vpack.c.b16 %v1664, %v1663
        %v1676 = vpack.c.b16 %v1666, %v1665
        %v1677 = vpack.c.b16 %v1668, %v1667
        %v1678 = vpack.c.b16 %v1670, %v1669
        %1687 = vmatpush.bf16.msra.mxu0 %v1678
        %1688 = vmatpush.bf16.msra.mxu0 %v1677
        %1689 = vmatpush.bf16.msra.mxu0 %v1676
        %1690 = vmatpush.bf16.msra.mxu0 %v1675
        %1691 = vmatpush.bf16.msra.mxu0 %v1674
        %1692 = vmatpush.bf16.msra.mxu0 %v1673
        %1693 = vmatpush.bf16.msra.mxu0 %v1672
        %1694 = vmatpush.bf16.msra.mxu0 %v1671
        %1695 = vmatmul.bf16.gmra.mxu0 %v1617
        %v1696 = vpop.f32.mrf.mxu0
        %v1697 = vadd.f32 %v1637, %v1696
        %v1698 = vpop.f32.mrf.mxu0
        %v1699 = vadd.f32 %v1637, %v1698
        %1700 = vmatmul.bf16.gmra.mxu0 %v1618
        %v1701 = vpop.f32.mrf.mxu0
        %v1702 = vadd.f32 %v1637, %v1701
        %v1703 = vpop.f32.mrf.mxu0
        %v1704 = vadd.f32 %v1637, %v1703
        %1705 = vdwg.mxu0
        %v1706 = vpack.c.bf16 %v1699, %v1697
        %v1707 = vpack.c.bf16 %v1704, %v1702
        %v1708 = vld [vmem:[#allocation11] sm:$0xff]
        %v1709 = vld [vmem:[#allocation11 + $0x8] sm:$0xff]
        %v1710 = vld [vmem:[#allocation11 + $0x10] sm:$0xff]
        %v1711 = vld [vmem:[#allocation11 + $0x18] sm:$0xff]
        %v1712 = vld [vmem:[#allocation11 + $0x20] sm:$0xff]
        %v1713 = vld [vmem:[#allocation11 + $0x28] sm:$0xff]
        %v1714 = vld [vmem:[#allocation11 + $0x30] sm:$0xff]
        %v1715 = vld [vmem:[#allocation11 + $0x38] sm:$0xff]
        %v1716 = vld [vmem:[#allocation11 + $0x40] sm:$0xff]
        %v1717 = vld [vmem:[#allocation11 + $0x48] sm:$0xff]
        %v1718 = vld [vmem:[#allocation11 + $0x50] sm:$0xff]
        %v1719 = vld [vmem:[#allocation11 + $0x58] sm:$0xff]
        %v1720 = vld [vmem:[#allocation11 + $0x60] sm:$0xff]
        %v1721 = vld [vmem:[#allocation11 + $0x68] sm:$0xff]
        %v1722 = vld [vmem:[#allocation11 + $0x70] sm:$0xff]
        %v1723 = vld [vmem:[#allocation11 + $0x78] sm:$0xff]
        %v1724 = vld [vmem:[#allocation11 + $0x80] sm:$0xff]
        %v1725 = vld [vmem:[#allocation11 + $0x88] sm:$0xff]
        %v1726 = vld [vmem:[#allocation11 + $0x90] sm:$0xff]
        %v1727 = vld [vmem:[#allocation11 + $0x98] sm:$0xff]
        %v1728 = vld [vmem:[#allocation11 + $0xa0] sm:$0xff]
        %v1729 = vld [vmem:[#allocation11 + $0xa8] sm:$0xff]
        %v1730 = vld [vmem:[#allocation11 + $0xb0] sm:$0xff]
        %v1731 = vld [vmem:[#allocation11 + $0xb8] sm:$0xff]
        %v1732 = vld [vmem:[#allocation11 + $0xc0] sm:$0xff]
        %v1733 = vld [vmem:[#allocation11 + $0xc8] sm:$0xff]
        %v1734 = vld [vmem:[#allocation11 + $0xd0] sm:$0xff]
        %v1735 = vld [vmem:[#allocation11 + $0xd8] sm:$0xff]
        %v1736 = vld [vmem:[#allocation11 + $0xe0] sm:$0xff]
        %v1737 = vld [vmem:[#allocation11 + $0xe8] sm:$0xff]
        %v1738 = vld [vmem:[#allocation11 + $0xf0] sm:$0xff]
        %v1739 = vld [vmem:[#allocation11 + $0xf8] sm:$0xff]
        %v1740 = vld [vmem:[%s9] sm:$0xf]
        %v1742 = vperm.slane %v1740, 0
        %v1743 = vperm.slane %v1740, 1
        %v1744 = vperm.slane %v1740, 2
        %v1745 = vperm.slane %v1740, 3
        %v1782 = vunpack.c.l.b16 %v1708
        %v1783 = vunpack.c.h.b16 %v1708
        %v1784 = vunpack.c.l.b16 %v1709
        %v1785 = vunpack.c.h.b16 %v1709
        %v1786 = vunpack.c.l.b16 %v1710
        %v1787 = vunpack.c.h.b16 %v1710
        %v1788 = vunpack.c.l.b16 %v1711
        %v1789 = vunpack.c.h.b16 %v1711
        %v1790 = vunpack.c.l.b16 %v1712
        %v1791 = vunpack.c.h.b16 %v1712
        %v1792 = vunpack.c.l.b16 %v1713
        %v1793 = vunpack.c.h.b16 %v1713
        %v1794 = vunpack.c.l.b16 %v1714
        %v1795 = vunpack.c.h.b16 %v1714
        %v1796 = vunpack.c.l.b16 %v1715
        %v1797 = vunpack.c.h.b16 %v1715
        %v1798 = vunpack.c.l.b16 %v1716
        %v1799 = vunpack.c.h.b16 %v1716
        %v1800 = vunpack.c.l.b16 %v1717
        %v1801 = vunpack.c.h.b16 %v1717
        %v1802 = vunpack.c.l.b16 %v1718
        %v1803 = vunpack.c.h.b16 %v1718
        %v1804 = vunpack.c.l.b16 %v1719
        %v1805 = vunpack.c.h.b16 %v1719
        %v1806 = vunpack.c.l.b16 %v1720
        %v1807 = vunpack.c.h.b16 %v1720
        %v1808 = vunpack.c.l.b16 %v1721
        %v1809 = vunpack.c.h.b16 %v1721
        %v1810 = vunpack.c.l.b16 %v1722
        %v1811 = vunpack.c.h.b16 %v1722
        %v1812 = vunpack.c.l.b16 %v1723
        %v1813 = vunpack.c.h.b16 %v1723
        %v1814 = vunpack.c.l.b16 %v1724
        %v1815 = vunpack.c.h.b16 %v1724
        %v1816 = vunpack.c.l.b16 %v1725
        %v1817 = vunpack.c.h.b16 %v1725
        %v1818 = vunpack.c.l.b16 %v1726
        %v1819 = vunpack.c.h.b16 %v1726
        %v1820 = vunpack.c.l.b16 %v1727
        %v1821 = vunpack.c.h.b16 %v1727
        %v1822 = vunpack.c.l.b16 %v1728
        %v1823 = vunpack.c.h.b16 %v1728
        %v1824 = vunpack.c.l.b16 %v1729
        %v1825 = vunpack.c.h.b16 %v1729
        %v1826 = vunpack.c.l.b16 %v1730
        %v1827 = vunpack.c.h.b16 %v1730
        %v1828 = vunpack.c.l.b16 %v1731
        %v1829 = vunpack.c.h.b16 %v1731
        %v1830 = vunpack.c.l.b16 %v1732
        %v1831 = vunpack.c.h.b16 %v1732
        %v1832 = vunpack.c.l.b16 %v1733
        %v1833 = vunpack.c.h.b16 %v1733
        %v1834 = vunpack.c.l.b16 %v1734
        %v1835 = vunpack.c.h.b16 %v1734
        %v1836 = vunpack.c.l.b16 %v1735
        %v1837 = vunpack.c.h.b16 %v1735
        %v1838 = vunpack.c.l.b16 %v1736
        %v1839 = vunpack.c.h.b16 %v1736
        %v1840 = vunpack.c.l.b16 %v1737
        %v1841 = vunpack.c.h.b16 %v1737
        %v1842 = vunpack.c.l.b16 %v1738
        %v1843 = vunpack.c.h.b16 %v1738
        %v1844 = vunpack.c.l.b16 %v1739
        %v1845 = vunpack.c.h.b16 %v1739
        %v1846 = vpack.c.b16 %v1786, %v1782
        %v1847 = vpack.c.b16 %v1787, %v1783
        %v1848 = vpack.c.b16 %v1788, %v1784
        %v1849 = vpack.c.b16 %v1789, %v1785
        %v1850 = vpack.c.b16 %v1794, %v1790
        %v1851 = vpack.c.b16 %v1795, %v1791
        %v1852 = vpack.c.b16 %v1796, %v1792
        %v1853 = vpack.c.b16 %v1797, %v1793
        %v1854 = vpack.c.b16 %v1802, %v1798
        %v1855 = vpack.c.b16 %v1803, %v1799
        %v1856 = vpack.c.b16 %v1804, %v1800
        %v1857 = vpack.c.b16 %v1805, %v1801
        %v1858 = vpack.c.b16 %v1810, %v1806
        %v1859 = vpack.c.b16 %v1811, %v1807
        %v1860 = vpack.c.b16 %v1812, %v1808
        %v1861 = vpack.c.b16 %v1813, %v1809
        %v1862 = vpack.c.b16 %v1818, %v1814
        %v1863 = vpack.c.b16 %v1819, %v1815
        %v1864 = vpack.c.b16 %v1820, %v1816
        %v1865 = vpack.c.b16 %v1821, %v1817
        %v1866 = vpack.c.b16 %v1826, %v1822
        %v1867 = vpack.c.b16 %v1827, %v1823
        %v1868 = vpack.c.b16 %v1828, %v1824
        %v1869 = vpack.c.b16 %v1829, %v1825
        %v1870 = vpack.c.b16 %v1834, %v1830
        %v1871 = vpack.c.b16 %v1835, %v1831
        %v1872 = vpack.c.b16 %v1836, %v1832
        %v1873 = vpack.c.b16 %v1837, %v1833
        %v1874 = vpack.c.b16 %v1842, %v1838
        %v1875 = vpack.c.b16 %v1843, %v1839
        %v1876 = vpack.c.b16 %v1844, %v1840
        %v1877 = vpack.c.b16 %v1845, %v1841
        %1910 = vmatpush.bf16.msra.mxu0 %v1874
        %1911 = vmatpush.bf16.msra.mxu0 %v1870
        %1912 = vmatpush.bf16.msra.mxu0 %v1866
        %1913 = vmatpush.bf16.msra.mxu0 %v1862
        %1914 = vmatpush.bf16.msra.mxu0 %v1858
        %1915 = vmatpush.bf16.msra.mxu0 %v1854
        %1916 = vmatpush.bf16.msra.mxu0 %v1850
        %1917 = vmatpush.bf16.msra.mxu0 %v1846
        %1918 = vmatmul.bf16.gmra.mxu0 %v1706
        %v1919 = vpop.f32.mrf.mxu0
        %v1920 = vadd.f32 %v1742, %v1919
        %v1921 = vpop.f32.mrf.mxu0
        %v1922 = vadd.f32 %v1742, %v1921
        %1923 = vmatmul.bf16.gmra.mxu0 %v1707
        %v1924 = vpop.f32.mrf.mxu0
        %v1925 = vadd.f32 %v1742, %v1924
        %v1926 = vpop.f32.mrf.mxu0
        %v1927 = vadd.f32 %v1742, %v1926
        %1928 = vdwg.mxu0
        %1929 = vmatpush.bf16.msra.mxu0 %v1875
        %1930 = vmatpush.bf16.msra.mxu0 %v1871
        %1931 = vmatpush.bf16.msra.mxu0 %v1867
        %1932 = vmatpush.bf16.msra.mxu0 %v1863
        %1933 = vmatpush.bf16.msra.mxu0 %v1859
        %1934 = vmatpush.bf16.msra.mxu0 %v1855
        %1935 = vmatpush.bf16.msra.mxu0 %v1851
        %1936 = vmatpush.bf16.msra.mxu0 %v1847
        %1937 = vmatmul.bf16.gmra.mxu0 %v1706
        %v1938 = vpop.f32.mrf.mxu0
        %v1939 = vadd.f32 %v1743, %v1938
        %v1940 = vpop.f32.mrf.mxu0
        %v1941 = vadd.f32 %v1743, %v1940
        %1942 = vmatmul.bf16.gmra.mxu0 %v1707
        %v1943 = vpop.f32.mrf.mxu0
        %v1944 = vadd.f32 %v1743, %v1943
        %v1945 = vpop.f32.mrf.mxu0
        %v1946 = vadd.f32 %v1743, %v1945
        %1947 = vdwg.mxu0
        %1948 = vmatpush.bf16.msra.mxu0 %v1876
        %1949 = vmatpush.bf16.msra.mxu0 %v1872
        %1950 = vmatpush.bf16.msra.mxu0 %v1868
        %1951 = vmatpush.bf16.msra.mxu0 %v1864
        %1952 = vmatpush.bf16.msra.mxu0 %v1860
        %1953 = vmatpush.bf16.msra.mxu0 %v1856
        %1954 = vmatpush.bf16.msra.mxu0 %v1852
        %1955 = vmatpush.bf16.msra.mxu0 %v1848
        %1956 = vmatmul.bf16.gmra.mxu0 %v1706
        %v1957 = vpop.f32.mrf.mxu0
        %v1958 = vadd.f32 %v1744, %v1957
        %v1959 = vpop.f32.mrf.mxu0
        %v1960 = vadd.f32 %v1744, %v1959
        %1961 = vmatmul.bf16.gmra.mxu0 %v1707
        %v1962 = vpop.f32.mrf.mxu0
        %v1963 = vadd.f32 %v1744, %v1962
        %v1964 = vpop.f32.mrf.mxu0
        %v1965 = vadd.f32 %v1744, %v1964
        %1966 = vdwg.mxu0
        %1967 = vmatpush.bf16.msra.mxu0 %v1877
        %1968 = vmatpush.bf16.msra.mxu0 %v1873
        %1969 = vmatpush.bf16.msra.mxu0 %v1869
        %1970 = vmatpush.bf16.msra.mxu0 %v1865
        %1971 = vmatpush.bf16.msra.mxu0 %v1861
        %1972 = vmatpush.bf16.msra.mxu0 %v1857
        %1973 = vmatpush.bf16.msra.mxu0 %v1853
        %1974 = vmatpush.bf16.msra.mxu0 %v1849
        %1975 = vmatmul.bf16.gmra.mxu0 %v1706
        %v1976 = vpop.f32.mrf.mxu0
        %v1977 = vadd.f32 %v1745, %v1976
        %v1978 = vpop.f32.mrf.mxu0
        %v1979 = vadd.f32 %v1745, %v1978
        %1980 = vmatmul.bf16.gmra.mxu0 %v1707
        %v1981 = vpop.f32.mrf.mxu0
        %v1982 = vadd.f32 %v1745, %v1981
        %v1983 = vpop.f32.mrf.mxu0
        %v1984 = vadd.f32 %v1745, %v1983
        %1985 = vdwg.mxu0
        %1986 = vst [vmem:[%s590] sm:$0xff] %v1920
        %1987 = vst [vmem:[%s590 + $0x8] sm:$0xff] %v1939
        %1988 = vst [vmem:[%s590 + $0x10] sm:$0xff] %v1958
        %1989 = vst [vmem:[%s590 + $0x18] sm:$0xff] %v1977
        %1990 = vst [vmem:[%s590 + $0x20] sm:$0xff] %v1922
        %1991 = vst [vmem:[%s590 + $0x28] sm:$0xff] %v1941
        %1992 = vst [vmem:[%s590 + $0x30] sm:$0xff] %v1960
        %1993 = vst [vmem:[%s590 + $0x38] sm:$0xff] %v1979
        %1994 = vst [vmem:[%s590 + $0x40] sm:$0xff] %v1925
        %1995 = vst [vmem:[%s590 + $0x48] sm:$0xff] %v1944
        %1996 = vst [vmem:[%s590 + $0x50] sm:$0xff] %v1963
        %1997 = vst [vmem:[%s590 + $0x58] sm:$0xff] %v1982
        %1998 = vst [vmem:[%s590 + $0x60] sm:$0xff] %v1927
        %1999 = vst [vmem:[%s590 + $0x68] sm:$0xff] %v1946
        %2000 = vst [vmem:[%s590 + $0x70] sm:$0xff] %v1965
        %2001 = vst [vmem:[%s590 + $0x78] sm:$0xff] %v1984
        %s2002 = sand.u32 %s270, 1
        %s2003 = scalar_lea.sflag [#allocation4], %s2002
        %s2004 = sand.u32 %s270, 1
        %s2005 = smul.addr %s2004, 256
        %s2006 = scalar_lea.vmem [#allocation13], %s2005
        %s2007 = sand.u32 %s42, 1
        %s2008 = scalar_lea.sflag [#allocation15], %s2007
        %s2009 = sand.u32 %s296, 1
        %s2010 = smul.addr %s2009, 256
        %s2011 = scalar_lea.vmem [#allocation14], %s2010
        %s2012 = sand.u32 %s42, 1
        %s2013 = scalar_lea.sflag [#allocation15], %s2012
        %s2014 = sand.u32 %s322, 1
        %s2015 = smul.addr %s2014, 128
        %s2016 = scalar_lea.vmem [#allocation16], %s2015
        %s2017 = sand.u32 %s348, 1
        %s2018 = scalar_lea.sflag [#allocation18], %s2017
        %s2019 = sand.u32 %s348, 1
        %s2020 = smul.addr %s2019, 32
        %s2021 = scalar_lea.vmem [#allocation17], %s2020
        // Predicated region
        $region85: #{tpu_custom_call.1} parent=59 // pred_check
          %p2022 = pneg %p280
        $region86: #{tpu_custom_call.1} parent=59 // pred_check_branch
          %2024 = sbr.rel (%p2022) target = $region88
        $region87: #{tpu_custom_call.1} parent=59 // pred_region
          %s2025 = smul.u32 4, %s42
          %2027 = vsyncadd %s2003, 0
          %s2028 = smul.addr %s2025, 8
          %s2029 = smul.addr %s2028, 8
          %s2030 = scalar_lea.hbm %s10, %s2029
          %s2031 = sshll.u32 %s2006, 4
          %s2032 = int_to_ptr.vmem [resolvable:$true] %s2031
          %s2033 = sshll.u32 %s2030, 4
          %s2034 = int_to_ptr.hbm [resolvable:$true] %s2033
          %2039 = dma.vmem_to_hbm [thread:$0]  %s2032, 4096, %s2034, %s2003, 128, 128, 8
        $region88: #{tpu_custom_call.1} parent=59 // pred_fallthru
          _
        // Predicated region
        $region89: #{tpu_custom_call.1} parent=59 // pred_check
          %p2040 = pneg %p306
        $region90: #{tpu_custom_call.1} parent=59 // pred_check_branch
          %2042 = sbr.rel (%p2040) target = $region92
        $region91: #{tpu_custom_call.1} parent=59 // pred_region
          %s2043 = smul.u32 4, %s42
          %2045 = vsyncadd %s2008, 0
          %s2046 = smul.addr %s2043, 8
          %s2047 = smul.addr %s2046, 8
          %s2048 = scalar_lea.hbm %s11, %s2047
          %s2049 = sshll.u32 %s2011, 4
          %s2050 = int_to_ptr.vmem [resolvable:$true] %s2049
          %s2051 = sshll.u32 %s2048, 4
          %s2052 = int_to_ptr.hbm [resolvable:$true] %s2051
          %2057 = dma.vmem_to_hbm [thread:$0]  %s2050, 4096, %s2052, %s2008, 128, 128, 8
        $region92: #{tpu_custom_call.1} parent=59 // pred_fallthru
          _
        // Predicated region
        $region93: #{tpu_custom_call.1} parent=59 // pred_check
          %p2058 = pneg %p332
        $region94: #{tpu_custom_call.1} parent=59 // pred_check_branch
          %2060 = sbr.rel (%p2058) target = $region96
        $region95: #{tpu_custom_call.1} parent=59 // pred_region
          %s2061 = smul.u32 4, %s42
          %2063 = vsyncadd %s2013, 0
          %s2064 = smul.addr %s2061, 4
          %s2065 = smul.addr %s2064, 8
          %s2066 = scalar_lea.hbm %s12, %s2065
          %s2067 = sshll.u32 %s2016, 4
          %s2068 = int_to_ptr.vmem [resolvable:$true] %s2067
          %s2069 = sshll.u32 %s2066, 4
          %s2070 = int_to_ptr.hbm [resolvable:$true] %s2069
          %2075 = dma.vmem_to_hbm [thread:$0]  %s2068, 2048, %s2070, %s2013, 512, 512, 32
        $region96: #{tpu_custom_call.1} parent=59 // pred_fallthru
          _
        // Predicated region
        $region97: #{tpu_custom_call.1} parent=59 // pred_check
          %p2076 = pneg %p358
        $region98: #{tpu_custom_call.1} parent=59 // pred_check_branch
          %2078 = sbr.rel (%p2076) target = $region100
        $region99: #{tpu_custom_call.1} parent=59 // pred_region
          %s2079 = smul.u32 4, %s42
          %2081 = vsyncadd %s2018, 0
          %s2082 = smul.addr %s2079, 8
          %s2083 = scalar_lea.hbm %s13, %s2082
          %s2084 = sshll.u32 %s2021, 4
          %s2085 = int_to_ptr.vmem [resolvable:$true] %s2084
          %s2086 = sshll.u32 %s2083, 4
          %s2087 = int_to_ptr.hbm [resolvable:$true] %s2086
          %2092 = dma.vmem_to_hbm [thread:$0]  %s2085, 512, %s2087, %s2018, 128, 128, 8
        $region100: #{tpu_custom_call.1} parent=59 // pred_fallthru
          _
      $region60: #{tpu_custom_call.1} parent=5 // pred_fallthru
        _
      %p2093 = scmp.le.s32.totalorder 2, %s37
      // Predicated region
      $region101: #{tpu_custom_call.1} parent=5 // pred_check
        %p2094 = pneg %p2093
      $region102: #{tpu_custom_call.1} parent=5 // pred_check_branch
        %2096 = sbr.rel (%p2094) target = $region104
      $region103: #{tpu_custom_call.1} parent=5 // pred_region
        %s2097 = ssub.s32 %s37, 2
        // Predicated region
        $region105: #{tpu_custom_call.1} parent=103 // pred_check
          %p2098 = pneg %p286
        $region106: #{tpu_custom_call.1} parent=103 // pred_check_branch
          %2100 = sbr.rel (%p2098) target = $region108
        $region107: #{tpu_custom_call.1} parent=103 // pred_region
          %s2101 = sand.u32 %s271, 1
          %s2102 = scalar_lea.sflag [#allocation4], %s2101
          %s2103 = sand.u32 %s271, 1
          %s2104 = smul.addr %s2103, 256
          %s2105 = scalar_lea.vmem [#allocation13], %s2104
          %2107 = dma.done %s2102, 4096
        $region108: #{tpu_custom_call.1} parent=103 // pred_fallthru
          _
        // Predicated region
        $region109: #{tpu_custom_call.1} parent=103 // pred_check
          %p2108 = pneg %p312
        $region110: #{tpu_custom_call.1} parent=103 // pred_check_branch
          %2110 = sbr.rel (%p2108) target = $region112
        $region111: #{tpu_custom_call.1} parent=103 // pred_region
          %s2111 = sand.u32 %s43, 1
          %s2112 = scalar_lea.sflag [#allocation15], %s2111
          %s2113 = sand.u32 %s297, 1
          %s2114 = smul.addr %s2113, 256
          %s2115 = scalar_lea.vmem [#allocation14], %s2114
          %2117 = dma.done %s2112, 4096
        $region112: #{tpu_custom_call.1} parent=103 // pred_fallthru
          _
        // Predicated region
        $region113: #{tpu_custom_call.1} parent=103 // pred_check
          %p2118 = pneg %p338
        $region114: #{tpu_custom_call.1} parent=103 // pred_check_branch
          %2120 = sbr.rel (%p2118) target = $region116
        $region115: #{tpu_custom_call.1} parent=103 // pred_region
          %s2121 = sand.u32 %s43, 1
          %s2122 = scalar_lea.sflag [#allocation15], %s2121
          %s2123 = sand.u32 %s323, 1
          %s2124 = smul.addr %s2123, 128
          %s2125 = scalar_lea.vmem [#allocation16], %s2124
          %2127 = dma.done %s2122, 2048
        $region116: #{tpu_custom_call.1} parent=103 // pred_fallthru
          _
        // Predicated region
        $region117: #{tpu_custom_call.1} parent=103 // pred_check
          %p2128 = pneg %p364
        $region118: #{tpu_custom_call.1} parent=103 // pred_check_branch
          %2130 = sbr.rel (%p2128) target = $region120
        $region119: #{tpu_custom_call.1} parent=103 // pred_region
          %s2131 = sand.u32 %s349, 1
          %s2132 = scalar_lea.sflag [#allocation18], %s2131
          %s2133 = sand.u32 %s349, 1
          %s2134 = smul.addr %s2133, 32
          %s2135 = scalar_lea.vmem [#allocation17], %s2134
          %2137 = dma.done %s2132, 512
        $region120: #{tpu_custom_call.1} parent=103 // pred_fallthru
          _
      $region104: #{tpu_custom_call.1} parent=5 // pred_fallthru
        _
    $region6: #{tpu_custom_call.1} parent=1 // loop_footer
      %s41 = sadd.s32 1, %s37
    $region7: #{tpu_custom_call.1} parent=1 // loop_footer_branch
      %36 = sbr.rel target = $region3
    $region8: #{tpu_custom_call.1} parent=1 // loop_exit
      _
    %2138 = vsyncpa [#allocation3], 1
    %s2139 = scalar_lea.sflag [#allocation3], 1
    %2140 = vsyncpa %s2139, 1
    %2141 = vsyncpa [#allocation6], 1
    %s2142 = scalar_lea.sflag [#allocation6], 1
    %2143 = vsyncpa %s2142, 1
    %2144 = vsyncpa [#allocation9], 1
    %2145 = vsyncpa [#allocation12], 1
    %2146 = vsyncpa [#allocation4], 1
    %s2147 = scalar_lea.sflag [#allocation4], 1
    %2148 = vsyncpa %s2147, 1
    %2149 = vsyncpa [#allocation15], 1
    %s2150 = scalar_lea.sflag [#allocation15], 1
    %2151 = vsyncpa %s2150, 1
    %2152 = vsyncpa [#allocation18], 1
    %s2153 = scalar_lea.sflag [#allocation18], 1
    %2154 = vsyncpa %s2153, 1

</llo_original>
